<compile_context>
chip_gen: v7x
topology: tpu7x:2x2x1
jax: 0.10.0
libtpu: 0.0.40
codegen_flags: <defaults>
</compile_context>

<pallas_src>
import jax
import jax.numpy as jnp
from jax.experimental import pallas as pl
from jax.experimental.pallas import tpu as pltpu

N = 64            # number of nodes (graph size)
D = 128           # embedding_dimension
NUM_REL = 2       # num_relations for RGCN
E_EXPERTS = 2     # expert_size
OUT = 2           # output_size (module default 0 is degenerate; pick 2 classes)
N_EDGES = 256

SELU_ALPHA = 1.6732632423543772
SELU_SCALE = 1.0507009873554805
LEAKY_SLOPE = 0.01  # nn.LeakyReLU default negative_slope


def botrgcn_kernel(x_ref, a_ref, w_in_ref, b_in_ref,
                   w_rg_ref, b_rg_ref,
                   w_m1_ref, b_m1_ref, w_m2_ref, b_m2_ref,
                   out_ref):
    x = x_ref[...]                                                   # (N, D) f32

    # ---- linear_relu_input: Linear(D, D) + SELU (elementwise in f32) ----
    h = jnp.dot(x.astype(jnp.bfloat16), w_in_ref[...],
                preferred_element_type=jnp.float32) + b_in_ref[...]
    h = SELU_SCALE * jnp.where(
        h > 0, h, SELU_ALPHA * (jnp.exp(jnp.minimum(h, 0.0)) - 1.0))

    a_cat = a_ref[...]                                               # (N, 2N) bf16
    w_rg = w_rg_ref[...]                                             # (D, 3D) bf16
    b_rg = b_rg_ref[...]                                             # (1, D) f32

    # ---- RGCNConv: out_i = W_root h_i + sum_r mean_{j in N_r(i)} W_r h_j + b
    # Fused: one (D, 3D) projection, one (N, 2N) x (2N, D) aggregation.
    def rgcn(hh):
        proj = jnp.dot(hh.astype(jnp.bfloat16), w_rg,
                       preferred_element_type=jnp.float32)           # (N, 3D)
        root = proj[:, 0:D]
        msg = jnp.concatenate(
            [proj[:, D:2 * D].astype(jnp.bfloat16),
             proj[:, 2 * D:3 * D].astype(jnp.bfloat16)], axis=0)     # (2N, D)
        agg = jnp.dot(a_cat, msg, preferred_element_type=jnp.float32)  # (N, D)
        return root + agg + b_rg

    h = rgcn(h)
    # F.dropout(..., training=False) == identity at inference
    h = rgcn(h)

    # ---- MoE (k=1): fused [w1_e0 | w1_e1 | gate_diff(pad)] matmul ----
    res = jnp.dot(h.astype(jnp.bfloat16), w_m1_ref[...],
                  preferred_element_type=jnp.float32) + b_m1_ref[...]  # (N, 3D)
    z0 = res[:, 0:D]
    z1 = res[:, D:2 * D]
    gate_diff = res[:, 2 * D:2 * D + 1]          # (N, 1) = logit1 - logit0
    # top-1 selection; ties -> expert 0 (matches torch.topk first-index tie-break)
    sel1 = gate_diff > 0.0

    # Select hidden state first, then LeakyReLU (elementwise commutes with select).
    z = jnp.where(sel1, z1, z0)
    z = jnp.where(z > 0, z, LEAKY_SLOPE * z)

    # Expert second layers packed into one (D, 2D) matmul:
    #   lanes [0:OUT]     = expert0 output (+ bias)
    #   lanes [D:D+OUT]   = expert1 output (+ bias)
    # Both experts' OUT columns sit at lane offset 0 of their own 128-lane tile,
    # so per-node selection is a tile-aligned slice + where (no roll, lane-dense).
    out_full = jnp.dot(z.astype(jnp.bfloat16), w_m2_ref[...],
                       preferred_element_type=jnp.float32) + b_m2_ref[...]  # (N, 2D)
    out = jnp.where(sel1, out_full[:, D:2 * D], out_full[:, 0:D])    # (N, D)
    out_ref[...] = out.astype(out_ref.dtype)


def build_adjacency(edge_index, edge_type, n, num_rel=NUM_REL):
    """Dense per-relation adjacency A[r, dst, src], row-normalized (mean aggr)."""
    src = edge_index[0]
    dst = edge_index[1]
    adj = jnp.zeros((num_rel, n, n), jnp.float32).at[edge_type, dst, src].add(1.0)
    deg = adj.sum(axis=2, keepdims=True)
    return adj / jnp.maximum(deg, 1.0)


def _fuse_params(params):
    """Pre-concatenate / pad weights so the kernel does few, wide matmuls."""
    bf16 = jnp.bfloat16
    # RGCN: [W_root | W_rel0 | W_rel1] -> (D, 3D)
    w_rg_f = jnp.concatenate(
        [params["w_root"]] + [params["w_rel"][r] for r in range(NUM_REL)],
        axis=1).astype(bf16)
    # MoE first layer + gate: [w1_e0 | w1_e1 | (gate1 - gate0) padded] -> (D, 3D)
    gate_diff = params["w_gate"][:, 1:2] - params["w_gate"][:, 0:1]   # (D, 1)
    gate_pad = jnp.pad(gate_diff, ((0, 0), (0, D - 1)))               # (D, D)
    w_m1_f = jnp.concatenate(
        [params["w1"][0], params["w1"][1], gate_pad], axis=1).astype(bf16)
    b_m1_f = jnp.concatenate(
        [params["b1"][0], params["b1"][1], jnp.zeros((1, D), jnp.float32)], axis=1)
    # MoE second layer: expert e's (D, OUT) weight at lanes [e*D : e*D+OUT]
    w_m2_f = jnp.zeros((D, 2 * D), jnp.float32)
    w_m2_f = w_m2_f.at[:, 0:OUT].set(params["w2"][0])
    w_m2_f = w_m2_f.at[:, D:D + OUT].set(params["w2"][1])
    b_m2_f = jnp.zeros((1, 2 * D), jnp.float32)
    b_m2_f = b_m2_f.at[:, 0:OUT].set(params["b2"][0])
    b_m2_f = b_m2_f.at[:, D:D + OUT].set(params["b2"][1])
    return dict(
        w_in=params["w_in"].astype(bf16), b_in=params["b_in"],
        w_rg=w_rg_f, b_rg=params["b_rg"],
        w_m1=w_m1_f, b_m1=b_m1_f,
        w_m2=w_m2_f.astype(bf16), b_m2=b_m2_f,
    )


@jax.jit
def botrgcn_fmoe1_forward(des, tweet, num_prop, cat_prop,
                          edge_index, edge_type, params):
    # Glue: concatenation + adjacency construction + weight fusion in plain JAX.
    # For a static graph / static weights these could be hoisted out entirely.
    x = jnp.concatenate([des, tweet, num_prop, cat_prop], axis=1).astype(jnp.float32)
    n = x.shape[0]
    adj = build_adjacency(edge_index, edge_type, n)
    # [A_rel0 | A_rel1] along the source axis -> one K=2N aggregation matmul.
    a_cat = jnp.concatenate([adj[r] for r in range(NUM_REL)],
                            axis=1).astype(jnp.bfloat16)              # (N, 2N)
    fp = _fuse_params(params)

    ins = (x, a_cat,
           fp["w_in"], fp["b_in"],
           fp["w_rg"], fp["b_rg"],
           fp["w_m1"], fp["b_m1"],
           fp["w_m2"], fp["b_m2"])

    vmem = pl.BlockSpec(memory_space=pltpu.MemorySpace.VMEM)
    # TODO(synk): if N / batch grows, add a grid over dst-node rows with
    # dimension_semantics=("parallel",) (2 TCs on v7x) and size tiles for
    # v7x's 64 MiB VMEM; at N=64 a single gridless call is optimal.
    out_pad = pl.pallas_call(
        botrgcn_kernel,
        out_shape=jax.ShapeDtypeStruct((n, D), jnp.float32),   # lane-dense output
        in_specs=[vmem] * len(ins),
        out_specs=vmem,
        cost_estimate=pl.CostEstimate(
            flops=27_000_000, transcendentals=8_192, bytes_accessed=400_000),
    )(*ins)
    return out_pad[:, :OUT]


def init_params(key):
    ks = jax.random.split(key, 12)
    p = {
        # linear_relu_input
        "w_in":   0.1 * jax.random.normal(ks[0], (D, D), jnp.float32),
        "b_in":   0.01 * jax.random.normal(ks[1], (1, D), jnp.float32),
        # RGCNConv (root weight, per-relation weights, bias)
        "w_root": 0.1 * jax.random.normal(ks[2], (D, D), jnp.float32),
        "w_rel":  0.1 * jax.random.normal(ks[3], (NUM_REL, D, D), jnp.float32),
        "b_rg":   0.01 * jax.random.normal(ks[4], (1, D), jnp.float32),
        # MoE gate
        "w_gate": 0.1 * jax.random.normal(ks[5], (D, E_EXPERTS), jnp.float32),
        # MoE experts: MLP(D -> D hidden -> OUT)
        "w1": 0.1 * jax.random.normal(ks[6], (E_EXPERTS, D, D), jnp.float32),
        "b1": 0.01 * jax.random.normal(ks[7], (E_EXPERTS, 1, D), jnp.float32),
        "w2": 0.1 * jax.random.normal(ks[8], (E_EXPERTS, D, OUT), jnp.float32),
        "b2": 0.01 * jax.random.normal(ks[9], (E_EXPERTS, 1, OUT), jnp.float32),
    }
    return p


if __name__ == "__main__":
    key = jax.random.PRNGKey(0)
    k_feat, k_graph, k_param = jax.random.split(key, 3)
    kd, kt, kn, kc = jax.random.split(k_feat, 4)
    ke1, ke2, ke3 = jax.random.split(k_graph, 3)

    # four feature blocks whose concatenation is the 128-d embedding
    des      = jax.random.normal(kd, (N, 32), jnp.float32)
    tweet    = jax.random.normal(kt, (N, 32), jnp.float32)
    num_prop = jax.random.normal(kn, (N, 32), jnp.float32)
    cat_prop = jax.random.normal(kc, (N, 32), jnp.float32)

    edge_src  = jax.random.randint(ke1, (N_EDGES,), 0, N)
    edge_dst  = jax.random.randint(ke2, (N_EDGES,), 0, N)
    edge_index = jnp.stack([edge_src, edge_dst], axis=0)             # (2, E)
    edge_type  = jax.random.randint(ke3, (N_EDGES,), 0, NUM_REL)     # (E,)

    params = init_params(k_param)

    # TODO(synk): F.dropout with training=True (stochastic) and fmoe's noisy
    # gating noise are not implemented; forward corresponds to eval mode.
    out = botrgcn_fmoe1_forward(des, tweet, num_prop, cat_prop,
                                edge_index, edge_type, params)
    out = jax.block_until_ready(out)

    assert out.shape == (N, OUT), out.shape
    assert out.dtype == jnp.float32
    assert bool(jnp.all(jnp.isfinite(out)))
    print("KERNEL_OK")
</pallas_src>

<mosaic_0001>
module attributes {stable_mosaic.version = 11 : i64} {
  func.func private @main(%arg0: i32) attributes {dimension_semantics = [#tpu.dimension_semantics<core_parallel>], iteration_bounds = array<i64: 2>, tpu.core_type = #tpu.core_type<sc_scalar_subcore>, window_params = []} {
    return
  }
}

module attributes {stable_mosaic.version = 11 : i64} {
  func.func private @main(%arg0: i32) attributes {dimension_semantics = [#tpu.dimension_semantics<core_parallel>], iteration_bounds = array<i64: 2>, tpu.core_type = #tpu.core_type<sc_scalar_subcore>, window_params = []} {
    return
  }
}

module attributes {stable_mosaic.version = 11 : i64} {
  func.func @botrgcn_kernel(%arg0: memref<64x128xf32, #tpu.memory_space<vmem>>, %arg1: memref<64x128xbf16, #tpu.memory_space<vmem>>, %arg2: memref<128x128xbf16, #tpu.memory_space<vmem>>, %arg3: memref<1x128xf32, #tpu.memory_space<vmem>>, %arg4: memref<128x384xbf16, #tpu.memory_space<vmem>>, %arg5: memref<1x128xf32, #tpu.memory_space<vmem>>, %arg6: memref<128x384xbf16, #tpu.memory_space<vmem>>, %arg7: memref<1x384xf32, #tpu.memory_space<vmem>>, %arg8: memref<128x256xbf16, #tpu.memory_space<vmem>>, %arg9: memref<1x256xf32, #tpu.memory_space<vmem>>, %arg10: memref<64x128xf32, #tpu.memory_space<vmem>>) attributes {dimension_semantics = [], scalar_prefetch = 0 : i64, scratch_operands = 0 : i64, tpu.core_type = #tpu.core_type<tc>} {
    %c0 = arith.constant 0 : index
    %c0_0 = arith.constant 0 : index
    %0 = vector.load %arg0[%c0, %c0_0] : memref<64x128xf32, #tpu.memory_space<vmem>>, vector<64x128xf32>
    %1 = arith.truncf %0 : vector<64x128xf32> to vector<64x128xbf16>
    %c0_1 = arith.constant 0 : index
    %c0_2 = arith.constant 0 : index
    %2 = vector.load %arg2[%c0_1, %c0_2] : memref<128x128xbf16, #tpu.memory_space<vmem>>, vector<128x128xbf16>
    %cst = arith.constant dense<0.000000e+00> : vector<64x128xf32>
    %3 = tpu.matmul %1, %2, %cst {dimension_numbers = #tpu.dot_dimension_numbers<[1], [0], [0], [1], [0, 0, 1, 1], [], []>} : vector<64x128xbf16>, vector<128x128xbf16>, vector<64x128xf32> -> vector<64x128xf32>
    %c0_3 = arith.constant 0 : index
    %c0_4 = arith.constant 0 : index
    %4 = vector.load %arg3[%c0_3, %c0_4] : memref<1x128xf32, #tpu.memory_space<vmem>>, vector<1x128xf32>
    %5 = vector.broadcast %4 : vector<1x128xf32> to vector<64x128xf32>
    %6 = arith.addf %3, %5 : vector<64x128xf32>
    %cst_5 = arith.constant 0.000000e+00 : f32
    %7 = vector.broadcast %cst_5 : f32 to vector<64x128xf32>
    %8 = arith.cmpf ogt, %6, %7 : vector<64x128xf32>
    %cst_6 = arith.constant 0.000000e+00 : f32
    %9 = vector.broadcast %cst_6 : f32 to vector<64x128xf32>
    %10 = arith.minimumf %6, %9 : vector<64x128xf32>
    %11 = math.exp %10 : vector<64x128xf32>
    %cst_7 = arith.constant 1.000000e+00 : f32
    %12 = vector.broadcast %cst_7 : f32 to vector<64x128xf32>
    %13 = arith.subf %11, %12 : vector<64x128xf32>
    %cst_8 = arith.constant 1.67326319 : f32
    %14 = vector.broadcast %cst_8 : f32 to vector<64x128xf32>
    %15 = arith.mulf %14, %13 : vector<64x128xf32>
    %16 = arith.select %8, %6, %15 : vector<64x128xi1>, vector<64x128xf32>
    %cst_9 = arith.constant 1.05070102 : f32
    %17 = vector.broadcast %cst_9 : f32 to vector<64x128xf32>
    %18 = arith.mulf %17, %16 : vector<64x128xf32>
    %c0_10 = arith.constant 0 : index
    %c0_11 = arith.constant 0 : index
    %19 = vector.load %arg1[%c0_10, %c0_11] : memref<64x128xbf16, #tpu.memory_space<vmem>>, vector<64x128xbf16>
    %c0_12 = arith.constant 0 : index
    %c0_13 = arith.constant 0 : index
    %20 = vector.load %arg4[%c0_12, %c0_13] : memref<128x384xbf16, #tpu.memory_space<vmem>>, vector<128x384xbf16>
    %c0_14 = arith.constant 0 : index
    %c0_15 = arith.constant 0 : index
    %21 = vector.load %arg5[%c0_14, %c0_15] : memref<1x128xf32, #tpu.memory_space<vmem>>, vector<1x128xf32>
    %22 = arith.truncf %18 : vector<64x128xf32> to vector<64x128xbf16>
    %cst_16 = arith.constant dense<0.000000e+00> : vector<64x384xf32>
    %23 = tpu.matmul %22, %20, %cst_16 {dimension_numbers = #tpu.dot_dimension_numbers<[1], [0], [0], [1], [0, 0, 1, 1], [], []>} : vector<64x128xbf16>, vector<128x384xbf16>, vector<64x384xf32> -> vector<64x384xf32>
    %24 = vector.extract_strided_slice %23 {offsets = [0, 0], sizes = [64, 128], strides = [1, 1]} : vector<64x384xf32> to vector<64x128xf32>
    %25 = vector.extract_strided_slice %23 {offsets = [0, 128], sizes = [64, 128], strides = [1, 1]} : vector<64x384xf32> to vector<64x128xf32>
    %26 = arith.truncf %25 : vector<64x128xf32> to vector<64x128xbf16>
    %27 = vector.extract_strided_slice %23 {offsets = [0, 256], sizes = [64, 128], strides = [1, 1]} : vector<64x384xf32> to vector<64x128xf32>
    %28 = arith.truncf %27 : vector<64x128xf32> to vector<64x128xbf16>
    %29 = tpu.concatenate %26, %28 in 0 : vector<64x128xbf16>, vector<64x128xbf16> -> vector<128x128xbf16>
    %cst_17 = arith.constant dense<0.000000e+00> : vector<64x128xf32>
    %30 = tpu.matmul %19, %29, %cst_17 {dimension_numbers = #tpu.dot_dimension_numbers<[1], [0], [0], [1], [0, 0, 1, 1], [], []>} : vector<64x128xbf16>, vector<128x128xbf16>, vector<64x128xf32> -> vector<64x128xf32>
    %31 = arith.addf %24, %30 : vector<64x128xf32>
    %32 = vector.broadcast %21 : vector<1x128xf32> to vector<64x128xf32>
    %33 = arith.addf %31, %32 : vector<64x128xf32>
    %34 = arith.truncf %33 : vector<64x128xf32> to vector<64x128xbf16>
    %cst_18 = arith.constant dense<0.000000e+00> : vector<64x384xf32>
    %35 = tpu.matmul %34, %20, %cst_18 {dimension_numbers = #tpu.dot_dimension_numbers<[1], [0], [0], [1], [0, 0, 1, 1], [], []>} : vector<64x128xbf16>, vector<128x384xbf16>, vector<64x384xf32> -> vector<64x384xf32>
    %36 = vector.extract_strided_slice %35 {offsets = [0, 0], sizes = [64, 128], strides = [1, 1]} : vector<64x384xf32> to vector<64x128xf32>
    %37 = vector.extract_strided_slice %35 {offsets = [0, 128], sizes = [64, 128], strides = [1, 1]} : vector<64x384xf32> to vector<64x128xf32>
    %38 = arith.truncf %37 : vector<64x128xf32> to vector<64x128xbf16>
    %39 = vector.extract_strided_slice %35 {offsets = [0, 256], sizes = [64, 128], strides = [1, 1]} : vector<64x384xf32> to vector<64x128xf32>
    %40 = arith.truncf %39 : vector<64x128xf32> to vector<64x128xbf16>
    %41 = tpu.concatenate %38, %40 in 0 : vector<64x128xbf16>, vector<64x128xbf16> -> vector<128x128xbf16>
    %cst_19 = arith.constant dense<0.000000e+00> : vector<64x128xf32>
    %42 = tpu.matmul %19, %41, %cst_19 {dimension_numbers = #tpu.dot_dimension_numbers<[1], [0], [0], [1], [0, 0, 1, 1], [], []>} : vector<64x128xbf16>, vector<128x128xbf16>, vector<64x128xf32> -> vector<64x128xf32>
    %43 = arith.addf %36, %42 : vector<64x128xf32>
    %44 = vector.broadcast %21 : vector<1x128xf32> to vector<64x128xf32>
    %45 = arith.addf %43, %44 : vector<64x128xf32>
    %46 = arith.truncf %45 : vector<64x128xf32> to vector<64x128xbf16>
    %c0_20 = arith.constant 0 : index
    %c0_21 = arith.constant 0 : index
    %47 = vector.load %arg6[%c0_20, %c0_21] : memref<128x384xbf16, #tpu.memory_space<vmem>>, vector<128x384xbf16>
    %cst_22 = arith.constant dense<0.000000e+00> : vector<64x384xf32>
    %48 = tpu.matmul %46, %47, %cst_22 {dimension_numbers = #tpu.dot_dimension_numbers<[1], [0], [0], [1], [0, 0, 1, 1], [], []>} : vector<64x128xbf16>, vector<128x384xbf16>, vector<64x384xf32> -> vector<64x384xf32>
    %c0_23 = arith.constant 0 : index
    %c0_24 = arith.constant 0 : index
    %49 = vector.load %arg7[%c0_23, %c0_24] : memref<1x384xf32, #tpu.memory_space<vmem>>, vector<1x384xf32>
    %50 = vector.broadcast %49 : vector<1x384xf32> to vector<64x384xf32>
    %51 = arith.addf %48, %50 : vector<64x384xf32>
    %52 = vector.extract_strided_slice %51 {offsets = [0, 0], sizes = [64, 128], strides = [1, 1]} : vector<64x384xf32> to vector<64x128xf32>
    %53 = vector.extract_strided_slice %51 {offsets = [0, 128], sizes = [64, 128], strides = [1, 1]} : vector<64x384xf32> to vector<64x128xf32>
    %54 = vector.extract_strided_slice %51 {offsets = [0, 256], sizes = [64, 1], strides = [1, 1]} : vector<64x384xf32> to vector<64x1xf32>
    %cst_25 = arith.constant 0.000000e+00 : f32
    %55 = vector.broadcast %cst_25 : f32 to vector<64x1xf32>
    %56 = arith.cmpf ogt, %54, %55 : vector<64x1xf32>
    %57 = vector.shape_cast %56 : vector<64x1xi1> to vector<64x1xi1>
    %58 = vector.broadcast %57 : vector<64x1xi1> to vector<64x128xi1>
    %59 = arith.select %58, %53, %52 : vector<64x128xi1>, vector<64x128xf32>
    %cst_26 = arith.constant 0.000000e+00 : f32
    %60 = vector.broadcast %cst_26 : f32 to vector<64x128xf32>
    %61 = arith.cmpf ogt, %59, %60 : vector<64x128xf32>
    %cst_27 = arith.constant 0.00999999977 : f32
    %62 = vector.broadcast %cst_27 : f32 to vector<64x128xf32>
    %63 = arith.mulf %62, %59 : vector<64x128xf32>
    %64 = arith.select %61, %59, %63 : vector<64x128xi1>, vector<64x128xf32>
    %65 = arith.truncf %64 : vector<64x128xf32> to vector<64x128xbf16>
    %c0_28 = arith.constant 0 : index
    %c0_29 = arith.constant 0 : index
    %66 = vector.load %arg8[%c0_28, %c0_29] : memref<128x256xbf16, #tpu.memory_space<vmem>>, vector<128x256xbf16>
    %cst_30 = arith.constant dense<0.000000e+00> : vector<64x256xf32>
    %67 = tpu.matmul %65, %66, %cst_30 {dimension_numbers = #tpu.dot_dimension_numbers<[1], [0], [0], [1], [0, 0, 1, 1], [], []>} : vector<64x128xbf16>, vector<128x256xbf16>, vector<64x256xf32> -> vector<64x256xf32>
    %c0_31 = arith.constant 0 : index
    %c0_32 = arith.constant 0 : index
    %68 = vector.load %arg9[%c0_31, %c0_32] : memref<1x256xf32, #tpu.memory_space<vmem>>, vector<1x256xf32>
    %69 = vector.broadcast %68 : vector<1x256xf32> to vector<64x256xf32>
    %70 = arith.addf %67, %69 : vector<64x256xf32>
    %71 = vector.extract_strided_slice %70 {offsets = [0, 128], sizes = [64, 128], strides = [1, 1]} : vector<64x256xf32> to vector<64x128xf32>
    %72 = vector.extract_strided_slice %70 {offsets = [0, 0], sizes = [64, 128], strides = [1, 1]} : vector<64x256xf32> to vector<64x128xf32>
    %73 = vector.shape_cast %56 : vector<64x1xi1> to vector<64x1xi1>
    %74 = vector.broadcast %73 : vector<64x1xi1> to vector<64x128xi1>
    %75 = arith.select %74, %71, %72 : vector<64x128xi1>, vector<64x128xf32>
    %c0_33 = arith.constant 0 : index
    %c0_34 = arith.constant 0 : index
    %76 = vector.load %arg10[%c0_33, %c0_34] : memref<64x128xf32, #tpu.memory_space<vmem>>, vector<64x128xf32>
    tpu.vector_store %arg10[%c0_33, %c0_34], %75 {strides = array<i32>} : memref<64x128xf32, #tpu.memory_space<vmem>>, vector<64x128xf32>,
    return
  }
}

</mosaic_0001>

<llo_original>
// kernel: botrgcn_fmoe1_forward.1
$region0: #{botrgcn_fmoe1_forward.1}
  #allocation0 [shape = 'u32[]', space=smem, size = 0x4, offset = 0x4, fixed_abs, tag = 'smem constant byte address 0x4 - core index']
  #allocation1 [shape = 'u32[144,128]{1,0:T(1,128)}', space=vmem, size = 0x12000, scoped, tag = 'internal scratch']
  %s0 = inlined_call_operand.vmem [shape: f32[64,128], index: 0, kind: input, shape index: {}]
  %s1 = inlined_call_operand.vmem [shape: bf16[64,128], index: 1, kind: input, shape index: {}]
  %s2 = inlined_call_operand.vmem [shape: bf16[128,128], index: 2, kind: input, shape index: {}]
  %s3 = inlined_call_operand.vmem [shape: f32[1,128], index: 3, kind: input, shape index: {}]
  %s4 = inlined_call_operand.vmem [shape: bf16[128,384], index: 4, kind: input, shape index: {}]
  %s5 = inlined_call_operand.vmem [shape: f32[1,128], index: 5, kind: input, shape index: {}]
  %s6 = inlined_call_operand.vmem [shape: bf16[128,384], index: 6, kind: input, shape index: {}]
  %s7 = inlined_call_operand.vmem [shape: f32[1,384], index: 7, kind: input, shape index: {}]
  %s8 = inlined_call_operand.vmem [shape: bf16[128,256], index: 8, kind: input, shape index: {}]
  %s9 = inlined_call_operand.vmem [shape: f32[1,256], index: 9, kind: input, shape index: {}]
  %s10 = inlined_call_operand.vmem [shape: f32[64,128], index: 10, kind: output, shape index: {}]
  %s11 = sld [smem:[#allocation0]]
  $region50: #{botrgcn_fmoe1_forward.1} parent=0
    _
  %s13 = ssub.s32 1, %s11
  %s14 = scalar_select 0, %s13, %s11
  // Predicated region
  $region2: #{botrgcn_fmoe1_forward.1} parent=0 // pred_check
    _
  $region3: #{botrgcn_fmoe1_forward.1} parent=0 // pred_check_branch
    %16 = sbr.rel (0) target = $region5
  $region4: #{botrgcn_fmoe1_forward.1} parent=0 // pred_region
    _
  $region5: #{botrgcn_fmoe1_forward.1} parent=0 // pred_fallthru
    _
  // Predicated region
  $region6: #{botrgcn_fmoe1_forward.1} parent=0 // pred_check
    _
  $region7: #{botrgcn_fmoe1_forward.1} parent=0 // pred_check_branch
    %18 = sbr.rel (0) target = $region9
  $region8: #{botrgcn_fmoe1_forward.1} parent=0 // pred_region
    _
  $region9: #{botrgcn_fmoe1_forward.1} parent=0 // pred_fallthru
    _
  // Predicated region
  $region10: #{botrgcn_fmoe1_forward.1} parent=0 // pred_check
    _
  $region11: #{botrgcn_fmoe1_forward.1} parent=0 // pred_check_branch
    %20 = sbr.rel (0) target = $region13
  $region12: #{botrgcn_fmoe1_forward.1} parent=0 // pred_region
    _
  $region13: #{botrgcn_fmoe1_forward.1} parent=0 // pred_fallthru
    _
  // Predicated region
  $region14: #{botrgcn_fmoe1_forward.1} parent=0 // pred_check
    _
  $region15: #{botrgcn_fmoe1_forward.1} parent=0 // pred_check_branch
    %22 = sbr.rel (0) target = $region17
  $region16: #{botrgcn_fmoe1_forward.1} parent=0 // pred_region
    _
  $region17: #{botrgcn_fmoe1_forward.1} parent=0 // pred_fallthru
    _
  // Predicated region
  $region18: #{botrgcn_fmoe1_forward.1} parent=0 // pred_check
    _
  $region19: #{botrgcn_fmoe1_forward.1} parent=0 // pred_check_branch
    %24 = sbr.rel (0) target = $region21
  $region20: #{botrgcn_fmoe1_forward.1} parent=0 // pred_region
    _
  $region21: #{botrgcn_fmoe1_forward.1} parent=0 // pred_fallthru
    _
  // Predicated region
  $region22: #{botrgcn_fmoe1_forward.1} parent=0 // pred_check
    _
  $region23: #{botrgcn_fmoe1_forward.1} parent=0 // pred_check_branch
    %26 = sbr.rel (0) target = $region25
  $region24: #{botrgcn_fmoe1_forward.1} parent=0 // pred_region
    _
  $region25: #{botrgcn_fmoe1_forward.1} parent=0 // pred_fallthru
    _
  // Predicated region
  $region26: #{botrgcn_fmoe1_forward.1} parent=0 // pred_check
    _
  $region27: #{botrgcn_fmoe1_forward.1} parent=0 // pred_check_branch
    %28 = sbr.rel (0) target = $region29
  $region28: #{botrgcn_fmoe1_forward.1} parent=0 // pred_region
    _
  $region29: #{botrgcn_fmoe1_forward.1} parent=0 // pred_fallthru
    _
  // Predicated region
  $region30: #{botrgcn_fmoe1_forward.1} parent=0 // pred_check
    _
  $region31: #{botrgcn_fmoe1_forward.1} parent=0 // pred_check_branch
    %30 = sbr.rel (0) target = $region33
  $region32: #{botrgcn_fmoe1_forward.1} parent=0 // pred_region
    _
  $region33: #{botrgcn_fmoe1_forward.1} parent=0 // pred_fallthru
    _
  // Predicated region
  $region34: #{botrgcn_fmoe1_forward.1} parent=0 // pred_check
    _
  $region35: #{botrgcn_fmoe1_forward.1} parent=0 // pred_check_branch
    %32 = sbr.rel (0) target = $region37
  $region36: #{botrgcn_fmoe1_forward.1} parent=0 // pred_region
    _
  $region37: #{botrgcn_fmoe1_forward.1} parent=0 // pred_fallthru
    _
  // Predicated region
  $region38: #{botrgcn_fmoe1_forward.1} parent=0 // pred_check
    _
  $region39: #{botrgcn_fmoe1_forward.1} parent=0 // pred_check_branch
    %34 = sbr.rel (0) target = $region41
  $region40: #{botrgcn_fmoe1_forward.1} parent=0 // pred_region
    _
  $region41: #{botrgcn_fmoe1_forward.1} parent=0 // pred_fallthru
    _
  %v36 = vld [vmem:[%s0] sm:$0xff]
  %v37 = vld [vmem:[%s0 + $0x8] sm:$0xff]
  %v38 = vld [vmem:[%s0 + $0x10] sm:$0xff]
  %v39 = vld [vmem:[%s0 + $0x18] sm:$0xff]
  %v40 = vld [vmem:[%s0 + $0x20] sm:$0xff]
  %v41 = vld [vmem:[%s0 + $0x28] sm:$0xff]
  %v42 = vld [vmem:[%s0 + $0x30] sm:$0xff]
  %v43 = vld [vmem:[%s0 + $0x38] sm:$0xff]
  %v44 = vpack.c.bf16 %v37, %v36
  %v45 = vpack.c.bf16 %v39, %v38
  %v46 = vpack.c.bf16 %v41, %v40
  %v47 = vpack.c.bf16 %v43, %v42
  %v48 = vld [vmem:[%s2] sm:$0xf]
  %v49 = vld [vmem:[%s2 + $0x4] sm:$0xf]
  %v50 = vld [vmem:[%s2 + $0x8] sm:$0xf]
  %v51 = vld [vmem:[%s2 + $0xc] sm:$0xf]
  %v52 = vld [vmem:[%s2 + $0x10] sm:$0xf]
  %v53 = vld [vmem:[%s2 + $0x14] sm:$0xf]
  %v54 = vld [vmem:[%s2 + $0x18] sm:$0xf]
  %v55 = vld [vmem:[%s2 + $0x1c] sm:$0xf]
  %v56 = vld [vmem:[%s2 + $0x20] sm:$0xf]
  %v57 = vld [vmem:[%s2 + $0x24] sm:$0xf]
  %v58 = vld [vmem:[%s2 + $0x28] sm:$0xf]
  %v59 = vld [vmem:[%s2 + $0x2c] sm:$0xf]
  %v60 = vld [vmem:[%s2 + $0x30] sm:$0xf]
  %v61 = vld [vmem:[%s2 + $0x34] sm:$0xf]
  %v62 = vld [vmem:[%s2 + $0x38] sm:$0xf]
  %v63 = vld [vmem:[%s2 + $0x3c] sm:$0xf]
  %v64 = vld [vmem:[%s3] sm:$0x1]
  %v66 = vlaneseq
  %v67 = vshrl.u32 %v66, 7
  %v68 = vsub.s32 0, %v67
  %v69 = vrot.slane %v64, %v68
  %v87 = vunpack.c.l.b16 %v48
  %v88 = vunpack.c.l.b16 %v49
  %v89 = vunpack.c.l.b16 %v50
  %v90 = vunpack.c.l.b16 %v51
  %v91 = vunpack.c.l.b16 %v52
  %v92 = vunpack.c.l.b16 %v53
  %v93 = vunpack.c.l.b16 %v54
  %v94 = vunpack.c.l.b16 %v55
  %v95 = vunpack.c.l.b16 %v56
  %v96 = vunpack.c.l.b16 %v57
  %v97 = vunpack.c.l.b16 %v58
  %v98 = vunpack.c.l.b16 %v59
  %v99 = vunpack.c.l.b16 %v60
  %v100 = vunpack.c.l.b16 %v61
  %v101 = vunpack.c.l.b16 %v62
  %v102 = vunpack.c.l.b16 %v63
  %v103 = vpack.c.b16 %v88, %v87
  %v104 = vpack.c.b16 %v90, %v89
  %v105 = vpack.c.b16 %v92, %v91
  %v106 = vpack.c.b16 %v94, %v93
  %v107 = vpack.c.b16 %v96, %v95
  %v108 = vpack.c.b16 %v98, %v97
  %v109 = vpack.c.b16 %v100, %v99
  %v110 = vpack.c.b16 %v102, %v101
  %119 = vmatprep.subr.bf16.mxu0 0
  %120 = vmatpush1.bf16.msra.mxu0 %v103
  %121 = vmatprep.subr.bf16.mxu0 0
  %122 = vmatpush1.bf16.msra.mxu0 %v104
  %123 = vmatprep.subr.bf16.mxu0 0
  %124 = vmatpush1.bf16.msra.mxu0 %v105
  %125 = vmatprep.subr.bf16.mxu0 0
  %126 = vmatpush1.bf16.msra.mxu0 %v106
  %127 = vmatprep.subr.bf16.mxu0 0
  %128 = vmatpush1.bf16.msra.mxu0 %v107
  %129 = vmatprep.subr.bf16.mxu0 0
  %130 = vmatpush1.bf16.msra.mxu0 %v108
  %131 = vmatprep.subr.bf16.mxu0 0
  %132 = vmatpush1.bf16.msra.mxu0 %v109
  %133 = vmatprep.subr.bf16.mxu0 0
  %134 = vmatpush1.bf16.msra.mxu0 %v110
  %135 = vmatprep.subr.bf16.mxu0 0
  %136 = vmatpush1.bf16.msra.mxu0 0
  %137 = vmatprep.subr.bf16.mxu0 0
  %138 = vmatpush1.bf16.msra.mxu0 0
  %139 = vmatprep.subr.bf16.mxu0 0
  %140 = vmatpush1.bf16.msra.mxu0 0
  %141 = vmatprep.subr.bf16.mxu0 0
  %142 = vmatpush1.bf16.msra.mxu0 0
  %143 = vmatprep.subr.bf16.mxu0 0
  %144 = vmatpush1.bf16.msra.mxu0 0
  %145 = vmatprep.subr.bf16.mxu0 0
  %146 = vmatpush1.bf16.msra.mxu0 0
  %147 = vmatprep.subr.bf16.mxu0 0
  %148 = vmatpush1.bf16.msra.mxu0 0
  %149 = vmatprep.subr.bf16.mxu0 0
  %150 = vmatpush1.bf16.msra.mxu0 0
  %151 = vmatprep.mubr.bf16.mxu0 0
  %152 = vmatmul.mubr.bf16.gmra.mrb[0].mxu0 %v44
  %v153 = vpop.f32.mrb[0].mxu0
  %v154 = vadd.f32 %v69, %v153
  %v155 = vpop.f32.mrb[0].mxu0
  %v156 = vpop.f32.mrb[0].mxu0
  %v157 = vadd.f32 %v69, %v156
  %v158 = vpop.f32.mrb[0].mxu0
  %159 = vmatprep.mubr.bf16.mxu0 0
  %160 = vmatmul.mubr.bf16.gmra.mrb[0].mxu0 %v45
  %v161 = vpop.f32.mrb[0].mxu0
  %v162 = vadd.f32 %v69, %v161
  %v163 = vpop.f32.mrb[0].mxu0
  %v164 = vpop.f32.mrb[0].mxu0
  %v165 = vadd.f32 %v69, %v164
  %v166 = vpop.f32.mrb[0].mxu0
  %167 = vmatprep.mubr.bf16.mxu0 0
  %168 = vmatmul.mubr.bf16.gmra.mrb[0].mxu0 %v46
  %v169 = vpop.f32.mrb[0].mxu0
  %v170 = vadd.f32 %v69, %v169
  %v171 = vpop.f32.mrb[0].mxu0
  %v172 = vpop.f32.mrb[0].mxu0
  %v173 = vadd.f32 %v69, %v172
  %v174 = vpop.f32.mrb[0].mxu0
  %175 = vmatprep.mubr.bf16.mxu0 0
  %176 = vmatmul.mubr.bf16.gmra.mrb[0].mxu0 %v47
  %v177 = vpop.f32.mrb[0].mxu0
  %v178 = vadd.f32 %v69, %v177
  %v179 = vpop.f32.mrb[0].mxu0
  %v180 = vpop.f32.mrb[0].mxu0
  %v181 = vadd.f32 %v69, %v180
  %v182 = vpop.f32.mrb[0].mxu0
  %183 = vdwg.mxu0
  %vm184 = vcmp.gt.f32.partialorder %v154, 0.0
  %vm185 = vcmp.gt.f32.partialorder %v157, 0.0
  %vm186 = vcmp.gt.f32.partialorder %v162, 0.0
  %vm187 = vcmp.gt.f32.partialorder %v165, 0.0
  %vm188 = vcmp.gt.f32.partialorder %v170, 0.0
  %vm189 = vcmp.gt.f32.partialorder %v173, 0.0
  %vm190 = vcmp.gt.f32.partialorder %v178, 0.0
  %vm191 = vcmp.gt.f32.partialorder %v181, 0.0
  %v192 = vmin.f32 %v154, 0.0
  %v193 = vmin.f32 %v157, 0.0
  %v194 = vmin.f32 %v162, 0.0
  %v195 = vmin.f32 %v165, 0.0
  %v196 = vmin.f32 %v170, 0.0
  %v197 = vmin.f32 %v173, 0.0
  %v198 = vmin.f32 %v178, 0.0
  %v199 = vmin.f32 %v181, 0.0
  %v200 = vmul.f32 %v192, 1.442695
  %v201 = vpow.pop %v200
  %v202 = vmul.f32 %v193, 1.442695
  %v203 = vpow.pop %v202
  %v204 = vmul.f32 %v194, 1.442695
  %v205 = vpow.pop %v204
  %v206 = vmul.f32 %v195, 1.442695
  %v207 = vpow.pop %v206
  %v208 = vmul.f32 %v196, 1.442695
  %v209 = vpow.pop %v208
  %v210 = vmul.f32 %v197, 1.442695
  %v211 = vpow.pop %v210
  %v212 = vmul.f32 %v198, 1.442695
  %v213 = vpow.pop %v212
  %v214 = vmul.f32 %v199, 1.442695
  %v215 = vpow.pop %v214
  %v216 = vsub.f32 %v201, 1.0
  %v217 = vsub.f32 %v203, 1.0
  %v218 = vsub.f32 %v205, 1.0
  %v219 = vsub.f32 %v207, 1.0
  %v220 = vsub.f32 %v209, 1.0
  %v221 = vsub.f32 %v211, 1.0
  %v222 = vsub.f32 %v213, 1.0
  %v223 = vsub.f32 %v215, 1.0
  %v224 = vmul.f32 %v216, 1.6732632
  %v225 = vmul.f32 %v217, 1.6732632
  %v226 = vmul.f32 %v218, 1.6732632
  %v227 = vmul.f32 %v219, 1.6732632
  %v228 = vmul.f32 %v220, 1.6732632
  %v229 = vmul.f32 %v221, 1.6732632
  %v230 = vmul.f32 %v222, 1.6732632
  %v231 = vmul.f32 %v223, 1.6732632
  %v232 = vsel %vm184, %v154, %v224
  %v233 = vsel %vm185, %v157, %v225
  %v234 = vsel %vm186, %v162, %v226
  %v235 = vsel %vm187, %v165, %v227
  %v236 = vsel %vm188, %v170, %v228
  %v237 = vsel %vm189, %v173, %v229
  %v238 = vsel %vm190, %v178, %v230
  %v239 = vsel %vm191, %v181, %v231
  %v240 = vmul.f32 %v232, 1.050701
  %v241 = vmul.f32 %v233, 1.050701
  %v242 = vmul.f32 %v234, 1.050701
  %v243 = vmul.f32 %v235, 1.050701
  %v244 = vmul.f32 %v236, 1.050701
  %v245 = vmul.f32 %v237, 1.050701
  %v246 = vmul.f32 %v238, 1.050701
  %v247 = vmul.f32 %v239, 1.050701
  %v248 = vld [vmem:[%s1] sm:$0xf]
  %v249 = vld [vmem:[%s1 + $0x4] sm:$0xf]
  %v250 = vld [vmem:[%s1 + $0x8] sm:$0xf]
  %v251 = vld [vmem:[%s1 + $0xc] sm:$0xf]
  %v252 = vld [vmem:[%s1 + $0x10] sm:$0xf]
  %v253 = vld [vmem:[%s1 + $0x14] sm:$0xf]
  %v254 = vld [vmem:[%s1 + $0x18] sm:$0xf]
  %v255 = vld [vmem:[%s1 + $0x1c] sm:$0xf]
  %v256 = vld [vmem:[%s4] sm:$0xff]
  %v257 = vld [vmem:[%s4 + $0x8] sm:$0xf]
  %v258 = vld [vmem:[%s4 + $0xc] sm:$0xff]
  %v259 = vld [vmem:[%s4 + $0x14] sm:$0xf]
  %v260 = vld [vmem:[%s4 + $0x18] sm:$0xff]
  %v261 = vld [vmem:[%s4 + $0x20] sm:$0xf]
  %v262 = vld [vmem:[%s4 + $0x24] sm:$0xff]
  %v263 = vld [vmem:[%s4 + $0x2c] sm:$0xf]
  %v264 = vld [vmem:[%s4 + $0x30] sm:$0xff]
  %v265 = vld [vmem:[%s4 + $0x38] sm:$0xf]
  %v266 = vld [vmem:[%s4 + $0x3c] sm:$0xff]
  %v267 = vld [vmem:[%s4 + $0x44] sm:$0xf]
  %v268 = vld [vmem:[%s4 + $0x48] sm:$0xff]
  %v269 = vld [vmem:[%s4 + $0x50] sm:$0xf]
  %v270 = vld [vmem:[%s4 + $0x54] sm:$0xff]
  %v271 = vld [vmem:[%s4 + $0x5c] sm:$0xf]
  %v272 = vld [vmem:[%s4 + $0x60] sm:$0xff]
  %v273 = vld [vmem:[%s4 + $0x68] sm:$0xf]
  %v274 = vld [vmem:[%s4 + $0x6c] sm:$0xff]
  %v275 = vld [vmem:[%s4 + $0x74] sm:$0xf]
  %v276 = vld [vmem:[%s4 + $0x78] sm:$0xff]
  %v277 = vld [vmem:[%s4 + $0x80] sm:$0xf]
  %v278 = vld [vmem:[%s4 + $0x84] sm:$0xff]
  %v279 = vld [vmem:[%s4 + $0x8c] sm:$0xf]
  %v280 = vld [vmem:[%s4 + $0x90] sm:$0xff]
  %v281 = vld [vmem:[%s4 + $0x98] sm:$0xf]
  %v282 = vld [vmem:[%s4 + $0x9c] sm:$0xff]
  %v283 = vld [vmem:[%s4 + $0xa4] sm:$0xf]
  %v284 = vld [vmem:[%s4 + $0xa8] sm:$0xff]
  %v285 = vld [vmem:[%s4 + $0xb0] sm:$0xf]
  %v286 = vld [vmem:[%s4 + $0xb4] sm:$0xff]
  %v287 = vld [vmem:[%s4 + $0xbc] sm:$0xf]
  %v288 = vld [vmem:[%s5] sm:$0x1]
  %v289 = vpack.c.bf16 %v241, %v240
  %v290 = vpack.c.bf16 %v243, %v242
  %v291 = vpack.c.bf16 %v245, %v244
  %v292 = vpack.c.bf16 %v247, %v246
  %v325 = vunpack.c.l.b16 %v256
  %v326 = vunpack.c.h.b16 %v256
  %v327 = vunpack.c.l.b16 %v257
  %v328 = vunpack.c.l.b16 %v258
  %v329 = vunpack.c.h.b16 %v258
  %v330 = vunpack.c.l.b16 %v259
  %v331 = vunpack.c.l.b16 %v260
  %v332 = vunpack.c.h.b16 %v260
  %v333 = vunpack.c.l.b16 %v261
  %v334 = vunpack.c.l.b16 %v262
  %v335 = vunpack.c.h.b16 %v262
  %v336 = vunpack.c.l.b16 %v263
  %v337 = vunpack.c.l.b16 %v264
  %v338 = vunpack.c.h.b16 %v264
  %v339 = vunpack.c.l.b16 %v265
  %v340 = vunpack.c.l.b16 %v266
  %v341 = vunpack.c.h.b16 %v266
  %v342 = vunpack.c.l.b16 %v267
  %v343 = vunpack.c.l.b16 %v268
  %v344 = vunpack.c.h.b16 %v268
  %v345 = vunpack.c.l.b16 %v269
  %v346 = vunpack.c.l.b16 %v270
  %v347 = vunpack.c.h.b16 %v270
  %v348 = vunpack.c.l.b16 %v271
  %v349 = vunpack.c.l.b16 %v272
  %v350 = vunpack.c.h.b16 %v272
  %v351 = vunpack.c.l.b16 %v273
  %v352 = vunpack.c.l.b16 %v274
  %v353 = vunpack.c.h.b16 %v274
  %v354 = vunpack.c.l.b16 %v275
  %v355 = vunpack.c.l.b16 %v276
  %v356 = vunpack.c.h.b16 %v276
  %v357 = vunpack.c.l.b16 %v277
  %v358 = vunpack.c.l.b16 %v278
  %v359 = vunpack.c.h.b16 %v278
  %v360 = vunpack.c.l.b16 %v279
  %v361 = vunpack.c.l.b16 %v280
  %v362 = vunpack.c.h.b16 %v280
  %v363 = vunpack.c.l.b16 %v281
  %v364 = vunpack.c.l.b16 %v282
  %v365 = vunpack.c.h.b16 %v282
  %v366 = vunpack.c.l.b16 %v283
  %v367 = vunpack.c.l.b16 %v284
  %v368 = vunpack.c.h.b16 %v284
  %v369 = vunpack.c.l.b16 %v285
  %v370 = vunpack.c.l.b16 %v286
  %v371 = vunpack.c.h.b16 %v286
  %v372 = vunpack.c.l.b16 %v287
  %v373 = vpack.c.b16 %v328, %v325
  %v374 = vpack.c.b16 %v329, %v326
  %v375 = vpack.c.b16 %v330, %v327
  %v376 = vpack.c.b16 %v334, %v331
  %v377 = vpack.c.b16 %v335, %v332
  %v378 = vpack.c.b16 %v336, %v333
  %v379 = vpack.c.b16 %v340, %v337
  %v380 = vpack.c.b16 %v341, %v338
  %v381 = vpack.c.b16 %v342, %v339
  %v382 = vpack.c.b16 %v346, %v343
  %v383 = vpack.c.b16 %v347, %v344
  %v384 = vpack.c.b16 %v348, %v345
  %v385 = vpack.c.b16 %v352, %v349
  %v386 = vpack.c.b16 %v353, %v350
  %v387 = vpack.c.b16 %v354, %v351
  %v388 = vpack.c.b16 %v358, %v355
  %v389 = vpack.c.b16 %v359, %v356
  %v390 = vpack.c.b16 %v360, %v357
  %v391 = vpack.c.b16 %v364, %v361
  %v392 = vpack.c.b16 %v365, %v362
  %v393 = vpack.c.b16 %v366, %v363
  %v394 = vpack.c.b16 %v370, %v367
  %v395 = vpack.c.b16 %v371, %v368
  %v396 = vpack.c.b16 %v372, %v369
  %421 = vmatprep.subr.bf16.mxu0 %v374
  %422 = vmatpush1.bf16.msra.mxu0 %v373
  %423 = vmatprep.subr.bf16.mxu0 %v377
  %424 = vmatpush1.bf16.msra.mxu0 %v376
  %425 = vmatprep.subr.bf16.mxu0 %v380
  %426 = vmatpush1.bf16.msra.mxu0 %v379
  %427 = vmatprep.subr.bf16.mxu0 %v383
  %428 = vmatpush1.bf16.msra.mxu0 %v382
  %429 = vmatprep.subr.bf16.mxu0 %v386
  %430 = vmatpush1.bf16.msra.mxu0 %v385
  %431 = vmatprep.subr.bf16.mxu0 %v389
  %432 = vmatpush1.bf16.msra.mxu0 %v388
  %433 = vmatprep.subr.bf16.mxu0 %v392
  %434 = vmatpush1.bf16.msra.mxu0 %v391
  %435 = vmatprep.subr.bf16.mxu0 %v395
  %436 = vmatpush1.bf16.msra.mxu0 %v394
  %437 = vmatprep.subr.bf16.mxu0 0
  %438 = vmatpush1.bf16.msra.mxu0 0
  %439 = vmatprep.subr.bf16.mxu0 0
  %440 = vmatpush1.bf16.msra.mxu0 0
  %441 = vmatprep.subr.bf16.mxu0 0
  %442 = vmatpush1.bf16.msra.mxu0 0
  %443 = vmatprep.subr.bf16.mxu0 0
  %444 = vmatpush1.bf16.msra.mxu0 0
  %445 = vmatprep.subr.bf16.mxu0 0
  %446 = vmatpush1.bf16.msra.mxu0 0
  %447 = vmatprep.subr.bf16.mxu0 0
  %448 = vmatpush1.bf16.msra.mxu0 0
  %449 = vmatprep.subr.bf16.mxu0 0
  %450 = vmatpush1.bf16.msra.mxu0 0
  %451 = vmatprep.subr.bf16.mxu0 0
  %452 = vmatpush1.bf16.msra.mxu0 0
  %453 = vmatprep.mubr.bf16.mxu0 0
  %454 = vmatmul.mubr.bf16.gmra.mrb[0].mxu0 %v289
  %v455 = vpop.f32.mrb[0].mxu0
  %v456 = vadd.f32 0.0, %v455
  %v457 = vpop.f32.mrb[0].mxu0
  %v458 = vadd.f32 0.0, %v457
  %v459 = vpop.f32.mrb[0].mxu0
  %v460 = vadd.f32 0.0, %v459
  %v461 = vpop.f32.mrb[0].mxu0
  %v462 = vadd.f32 0.0, %v461
  %463 = vmatprep.mubr.bf16.mxu0 0
  %464 = vmatmul.mubr.bf16.gmra.mrb[0].mxu0 %v290
  %v465 = vpop.f32.mrb[0].mxu0
  %v466 = vadd.f32 0.0, %v465
  %v467 = vpop.f32.mrb[0].mxu0
  %v468 = vadd.f32 0.0, %v467
  %v469 = vpop.f32.mrb[0].mxu0
  %v470 = vadd.f32 0.0, %v469
  %v471 = vpop.f32.mrb[0].mxu0
  %v472 = vadd.f32 0.0, %v471
  %473 = vmatprep.mubr.bf16.mxu0 0
  %474 = vmatmul.mubr.bf16.gmra.mrb[0].mxu0 %v291
  %v475 = vpop.f32.mrb[0].mxu0
  %v476 = vadd.f32 0.0, %v475
  %v477 = vpop.f32.mrb[0].mxu0
  %v478 = vadd.f32 0.0, %v477
  %v479 = vpop.f32.mrb[0].mxu0
  %v480 = vadd.f32 0.0, %v479
  %v481 = vpop.f32.mrb[0].mxu0
  %v482 = vadd.f32 0.0, %v481
  %483 = vmatprep.mubr.bf16.mxu0 0
  %484 = vmatmul.mubr.bf16.gmra.mrb[0].mxu0 %v292
  %v485 = vpop.f32.mrb[0].mxu0
  %v486 = vadd.f32 0.0, %v485
  %v487 = vpop.f32.mrb[0].mxu0
  %v488 = vadd.f32 0.0, %v487
  %v489 = vpop.f32.mrb[0].mxu0
  %v490 = vadd.f32 0.0, %v489
  %v491 = vpop.f32.mrb[0].mxu0
  %v492 = vadd.f32 0.0, %v491
  %493 = vdwg.mxu0
  %494 = vmatprep.subr.bf16.mxu0 0
  %495 = vmatpush1.bf16.msra.mxu0 %v375
  %496 = vmatprep.subr.bf16.mxu0 0
  %497 = vmatpush1.bf16.msra.mxu0 %v378
  %498 = vmatprep.subr.bf16.mxu0 0
  %499 = vmatpush1.bf16.msra.mxu0 %v381
  %500 = vmatprep.subr.bf16.mxu0 0
  %501 = vmatpush1.bf16.msra.mxu0 %v384
  %502 = vmatprep.subr.bf16.mxu0 0
  %503 = vmatpush1.bf16.msra.mxu0 %v387
  %504 = vmatprep.subr.bf16.mxu0 0
  %505 = vmatpush1.bf16.msra.mxu0 %v390
  %506 = vmatprep.subr.bf16.mxu0 0
  %507 = vmatpush1.bf16.msra.mxu0 %v393
  %508 = vmatprep.subr.bf16.mxu0 0
  %509 = vmatpush1.bf16.msra.mxu0 %v396
  %510 = vmatprep.subr.bf16.mxu0 0
  %511 = vmatpush1.bf16.msra.mxu0 0
  %512 = vmatprep.subr.bf16.mxu0 0
  %513 = vmatpush1.bf16.msra.mxu0 0
  %514 = vmatprep.subr.bf16.mxu0 0
  %515 = vmatpush1.bf16.msra.mxu0 0
  %516 = vmatprep.subr.bf16.mxu0 0
  %517 = vmatpush1.bf16.msra.mxu0 0
  %518 = vmatprep.subr.bf16.mxu0 0
  %519 = vmatpush1.bf16.msra.mxu0 0
  %520 = vmatprep.subr.bf16.mxu0 0
  %521 = vmatpush1.bf16.msra.mxu0 0
  %522 = vmatprep.subr.bf16.mxu0 0
  %523 = vmatpush1.bf16.msra.mxu0 0
  %524 = vmatprep.subr.bf16.mxu0 0
  %525 = vmatpush1.bf16.msra.mxu0 0
  %526 = vmatprep.mubr.bf16.mxu0 0
  %527 = vmatmul.mubr.bf16.gmra.mrb[0].mxu0 %v289
  %v528 = vpop.f32.mrb[0].mxu0
  %v529 = vadd.f32 0.0, %v528
  %v530 = vpop.f32.mrb[0].mxu0
  %v531 = vpop.f32.mrb[0].mxu0
  %v532 = vadd.f32 0.0, %v531
  %v533 = vpop.f32.mrb[0].mxu0
  %534 = vmatprep.mubr.bf16.mxu0 0
  %535 = vmatmul.mubr.bf16.gmra.mrb[0].mxu0 %v290
  %v536 = vpop.f32.mrb[0].mxu0
  %v537 = vadd.f32 0.0, %v536
  %v538 = vpop.f32.mrb[0].mxu0
  %v539 = vpop.f32.mrb[0].mxu0
  %v540 = vadd.f32 0.0, %v539
  %v541 = vpop.f32.mrb[0].mxu0
  %542 = vmatprep.mubr.bf16.mxu0 0
  %543 = vmatmul.mubr.bf16.gmra.mrb[0].mxu0 %v291
  %v544 = vpop.f32.mrb[0].mxu0
  %v545 = vadd.f32 0.0, %v544
  %v546 = vpop.f32.mrb[0].mxu0
  %v547 = vpop.f32.mrb[0].mxu0
  %v548 = vadd.f32 0.0, %v547
  %v549 = vpop.f32.mrb[0].mxu0
  %550 = vmatprep.mubr.bf16.mxu0 0
  %551 = vmatmul.mubr.bf16.gmra.mrb[0].mxu0 %v292
  %v552 = vpop.f32.mrb[0].mxu0
  %v553 = vadd.f32 0.0, %v552
  %v554 = vpop.f32.mrb[0].mxu0
  %v555 = vpop.f32.mrb[0].mxu0
  %v556 = vadd.f32 0.0, %v555
  %v557 = vpop.f32.mrb[0].mxu0
  %558 = vdwg.mxu0
  %v559 = vpack.c.bf16 %v462, %v458
  %v560 = vpack.c.bf16 %v472, %v468
  %v561 = vpack.c.bf16 %v482, %v478
  %v562 = vpack.c.bf16 %v492, %v488
  %v563 = vpack.c.bf16 %v532, %v529
  %v564 = vpack.c.bf16 %v540, %v537
  %v565 = vpack.c.bf16 %v548, %v545
  %v566 = vpack.c.bf16 %v556, %v553
  %v575 = vunpack.c.l.b16 %v248
  %v576 = vunpack.c.l.b16 %v249
  %v577 = vunpack.c.l.b16 %v250
  %v578 = vunpack.c.l.b16 %v251
  %v579 = vunpack.c.l.b16 %v252
  %v580 = vunpack.c.l.b16 %v253
  %v581 = vunpack.c.l.b16 %v254
  %v582 = vunpack.c.l.b16 %v255
  %v583 = vpack.c.b16 %v576, %v575
  %v584 = vpack.c.b16 %v578, %v577
  %v585 = vpack.c.b16 %v580, %v579
  %v586 = vpack.c.b16 %v582, %v581
  %591 = vmatprep.subr.bf16.mxu0 0
  %592 = vmatpush1.bf16.msra.mxu0 %v559
  %593 = vmatprep.subr.bf16.mxu0 0
  %594 = vmatpush1.bf16.msra.mxu0 %v560
  %595 = vmatprep.subr.bf16.mxu0 0
  %596 = vmatpush1.bf16.msra.mxu0 %v561
  %597 = vmatprep.subr.bf16.mxu0 0
  %598 = vmatpush1.bf16.msra.mxu0 %v562
  %599 = vmatprep.subr.bf16.mxu0 0
  %600 = vmatpush1.bf16.msra.mxu0 %v563
  %601 = vmatprep.subr.bf16.mxu0 0
  %602 = vmatpush1.bf16.msra.mxu0 %v564
  %603 = vmatprep.subr.bf16.mxu0 0
  %604 = vmatpush1.bf16.msra.mxu0 %v565
  %605 = vmatprep.subr.bf16.mxu0 0
  %606 = vmatpush1.bf16.msra.mxu0 %v566
  %607 = vmatprep.subr.bf16.mxu0 0
  %608 = vmatpush1.bf16.msra.mxu0 0
  %609 = vmatprep.subr.bf16.mxu0 0
  %610 = vmatpush1.bf16.msra.mxu0 0
  %611 = vmatprep.subr.bf16.mxu0 0
  %612 = vmatpush1.bf16.msra.mxu0 0
  %613 = vmatprep.subr.bf16.mxu0 0
  %614 = vmatpush1.bf16.msra.mxu0 0
  %615 = vmatprep.subr.bf16.mxu0 0
  %616 = vmatpush1.bf16.msra.mxu0 0
  %617 = vmatprep.subr.bf16.mxu0 0
  %618 = vmatpush1.bf16.msra.mxu0 0
  %619 = vmatprep.subr.bf16.mxu0 0
  %620 = vmatpush1.bf16.msra.mxu0 0
  %621 = vmatprep.subr.bf16.mxu0 0
  %622 = vmatpush1.bf16.msra.mxu0 0
  %623 = vmatprep.mubr.bf16.mxu0 0
  %624 = vmatmul.mubr.bf16.gmra.mrb[0].mxu0 %v583
  %v625 = vpop.f32.mrb[0].mxu0
  %v626 = vadd.f32 0.0, %v625
  %v627 = vpop.f32.mrb[0].mxu0
  %v628 = vpop.f32.mrb[0].mxu0
  %v629 = vadd.f32 0.0, %v628
  %v630 = vpop.f32.mrb[0].mxu0
  %631 = vmatprep.mubr.bf16.mxu0 0
  %632 = vmatmul.mubr.bf16.gmra.mrb[0].mxu0 %v584
  %v633 = vpop.f32.mrb[0].mxu0
  %v634 = vadd.f32 0.0, %v633
  %v635 = vpop.f32.mrb[0].mxu0
  %v636 = vpop.f32.mrb[0].mxu0
  %v637 = vadd.f32 0.0, %v636
  %v638 = vpop.f32.mrb[0].mxu0
  %639 = vmatprep.mubr.bf16.mxu0 0
  %640 = vmatmul.mubr.bf16.gmra.mrb[0].mxu0 %v585
  %v641 = vpop.f32.mrb[0].mxu0
  %v642 = vadd.f32 0.0, %v641
  %v643 = vpop.f32.mrb[0].mxu0
  %v644 = vpop.f32.mrb[0].mxu0
  %v645 = vadd.f32 0.0, %v644
  %v646 = vpop.f32.mrb[0].mxu0
  %647 = vmatprep.mubr.bf16.mxu0 0
  %648 = vmatmul.mubr.bf16.gmra.mrb[0].mxu0 %v586
  %v649 = vpop.f32.mrb[0].mxu0
  %v650 = vadd.f32 0.0, %v649
  %v651 = vpop.f32.mrb[0].mxu0
  %v652 = vpop.f32.mrb[0].mxu0
  %v653 = vadd.f32 0.0, %v652
  %v654 = vpop.f32.mrb[0].mxu0
  %655 = vdwg.mxu0
  %v656 = vadd.f32 %v456, %v626
  %v657 = vadd.f32 %v460, %v629
  %v658 = vadd.f32 %v466, %v634
  %v659 = vadd.f32 %v470, %v637
  %v660 = vadd.f32 %v476, %v642
  %v661 = vadd.f32 %v480, %v645
  %v662 = vadd.f32 %v486, %v650
  %v663 = vadd.f32 %v490, %v653
  %v665 = vlaneseq
  %v666 = vshrl.u32 %v665, 7
  %v667 = vsub.s32 0, %v666
  %v668 = vrot.slane %v288, %v667
  %v670 = vadd.f32 %v656, %v668
  %v671 = vadd.f32 %v657, %v668
  %v672 = vadd.f32 %v658, %v668
  %v673 = vadd.f32 %v659, %v668
  %v674 = vadd.f32 %v660, %v668
  %v675 = vadd.f32 %v661, %v668
  %v676 = vadd.f32 %v662, %v668
  %v677 = vadd.f32 %v663, %v668
  %v678 = vpack.c.bf16 %v671, %v670
  %v679 = vpack.c.bf16 %v673, %v672
  %v680 = vpack.c.bf16 %v675, %v674
  %v681 = vpack.c.bf16 %v677, %v676
  %682 = vmatprep.subr.bf16.mxu0 %v374
  %683 = vmatpush1.bf16.msra.mxu0 %v373
  %684 = vmatprep.subr.bf16.mxu0 %v377
  %685 = vmatpush1.bf16.msra.mxu0 %v376
  %686 = vmatprep.subr.bf16.mxu0 %v380
  %687 = vmatpush1.bf16.msra.mxu0 %v379
  %688 = vmatprep.subr.bf16.mxu0 %v383
  %689 = vmatpush1.bf16.msra.mxu0 %v382
  %690 = vmatprep.subr.bf16.mxu0 %v386
  %691 = vmatpush1.bf16.msra.mxu0 %v385
  %692 = vmatprep.subr.bf16.mxu0 %v389
  %693 = vmatpush1.bf16.msra.mxu0 %v388
  %694 = vmatprep.subr.bf16.mxu0 %v392
  %695 = vmatpush1.bf16.msra.mxu0 %v391
  %696 = vmatprep.subr.bf16.mxu0 %v395
  %697 = vmatpush1.bf16.msra.mxu0 %v394
  %698 = vmatprep.subr.bf16.mxu0 0
  %699 = vmatpush1.bf16.msra.mxu0 0
  %700 = vmatprep.subr.bf16.mxu0 0
  %701 = vmatpush1.bf16.msra.mxu0 0
  %702 = vmatprep.subr.bf16.mxu0 0
  %703 = vmatpush1.bf16.msra.mxu0 0
  %704 = vmatprep.subr.bf16.mxu0 0
  %705 = vmatpush1.bf16.msra.mxu0 0
  %706 = vmatprep.subr.bf16.mxu0 0
  %707 = vmatpush1.bf16.msra.mxu0 0
  %708 = vmatprep.subr.bf16.mxu0 0
  %709 = vmatpush1.bf16.msra.mxu0 0
  %710 = vmatprep.subr.bf16.mxu0 0
  %711 = vmatpush1.bf16.msra.mxu0 0
  %712 = vmatprep.subr.bf16.mxu0 0
  %713 = vmatpush1.bf16.msra.mxu0 0
  %714 = vmatprep.mubr.bf16.mxu0 0
  %715 = vmatmul.mubr.bf16.gmra.mrb[0].mxu0 %v678
  %v716 = vpop.f32.mrb[0].mxu0
  %v717 = vadd.f32 0.0, %v716
  %v718 = vpop.f32.mrb[0].mxu0
  %v719 = vadd.f32 0.0, %v718
  %v720 = vpop.f32.mrb[0].mxu0
  %v721 = vadd.f32 0.0, %v720
  %v722 = vpop.f32.mrb[0].mxu0
  %v723 = vadd.f32 0.0, %v722
  %724 = vmatprep.mubr.bf16.mxu0 0
  %725 = vmatmul.mubr.bf16.gmra.mrb[0].mxu0 %v679
  %v726 = vpop.f32.mrb[0].mxu0
  %v727 = vadd.f32 0.0, %v726
  %v728 = vpop.f32.mrb[0].mxu0
  %v729 = vadd.f32 0.0, %v728
  %v730 = vpop.f32.mrb[0].mxu0
  %v731 = vadd.f32 0.0, %v730
  %v732 = vpop.f32.mrb[0].mxu0
  %v733 = vadd.f32 0.0, %v732
  %734 = vmatprep.mubr.bf16.mxu0 0
  %735 = vmatmul.mubr.bf16.gmra.mrb[0].mxu0 %v680
  %v736 = vpop.f32.mrb[0].mxu0
  %v737 = vadd.f32 0.0, %v736
  %v738 = vpop.f32.mrb[0].mxu0
  %v739 = vadd.f32 0.0, %v738
  %v740 = vpop.f32.mrb[0].mxu0
  %v741 = vadd.f32 0.0, %v740
  %v742 = vpop.f32.mrb[0].mxu0
  %v743 = vadd.f32 0.0, %v742
  %744 = vmatprep.mubr.bf16.mxu0 0
  %745 = vmatmul.mubr.bf16.gmra.mrb[0].mxu0 %v681
  %v746 = vpop.f32.mrb[0].mxu0
  %v747 = vadd.f32 0.0, %v746
  %v748 = vpop.f32.mrb[0].mxu0
  %v749 = vadd.f32 0.0, %v748
  %v750 = vpop.f32.mrb[0].mxu0
  %v751 = vadd.f32 0.0, %v750
  %v752 = vpop.f32.mrb[0].mxu0
  %v753 = vadd.f32 0.0, %v752
  %754 = vdwg.mxu0
  %755 = vmatprep.subr.bf16.mxu0 0
  %756 = vmatpush1.bf16.msra.mxu0 %v375
  %757 = vmatprep.subr.bf16.mxu0 0
  %758 = vmatpush1.bf16.msra.mxu0 %v378
  %759 = vmatprep.subr.bf16.mxu0 0
  %760 = vmatpush1.bf16.msra.mxu0 %v381
  %761 = vmatprep.subr.bf16.mxu0 0
  %762 = vmatpush1.bf16.msra.mxu0 %v384
  %763 = vmatprep.subr.bf16.mxu0 0
  %764 = vmatpush1.bf16.msra.mxu0 %v387
  %765 = vmatprep.subr.bf16.mxu0 0
  %766 = vmatpush1.bf16.msra.mxu0 %v390
  %767 = vmatprep.subr.bf16.mxu0 0
  %768 = vmatpush1.bf16.msra.mxu0 %v393
  %769 = vmatprep.subr.bf16.mxu0 0
  %770 = vmatpush1.bf16.msra.mxu0 %v396
  %771 = vmatprep.subr.bf16.mxu0 0
  %772 = vmatpush1.bf16.msra.mxu0 0
  %773 = vmatprep.subr.bf16.mxu0 0
  %774 = vmatpush1.bf16.msra.mxu0 0
  %775 = vmatprep.subr.bf16.mxu0 0
  %776 = vmatpush1.bf16.msra.mxu0 0
  %777 = vmatprep.subr.bf16.mxu0 0
  %778 = vmatpush1.bf16.msra.mxu0 0
  %779 = vmatprep.subr.bf16.mxu0 0
  %780 = vmatpush1.bf16.msra.mxu0 0
  %781 = vmatprep.subr.bf16.mxu0 0
  %782 = vmatpush1.bf16.msra.mxu0 0
  %783 = vmatprep.subr.bf16.mxu0 0
  %784 = vmatpush1.bf16.msra.mxu0 0
  %785 = vmatprep.subr.bf16.mxu0 0
  %786 = vmatpush1.bf16.msra.mxu0 0
  %787 = vmatprep.mubr.bf16.mxu0 0
  %788 = vmatmul.mubr.bf16.gmra.mrb[0].mxu0 %v678
  %v789 = vpop.f32.mrb[0].mxu0
  %v790 = vadd.f32 0.0, %v789
  %v791 = vpop.f32.mrb[0].mxu0
  %v792 = vpop.f32.mrb[0].mxu0
  %v793 = vadd.f32 0.0, %v792
  %v794 = vpop.f32.mrb[0].mxu0
  %795 = vmatprep.mubr.bf16.mxu0 0
  %796 = vmatmul.mubr.bf16.gmra.mrb[0].mxu0 %v679
  %v797 = vpop.f32.mrb[0].mxu0
  %v798 = vadd.f32 0.0, %v797
  %v799 = vpop.f32.mrb[0].mxu0
  %v800 = vpop.f32.mrb[0].mxu0
  %v801 = vadd.f32 0.0, %v800
  %v802 = vpop.f32.mrb[0].mxu0
  %803 = vmatprep.mubr.bf16.mxu0 0
  %804 = vmatmul.mubr.bf16.gmra.mrb[0].mxu0 %v680
  %v805 = vpop.f32.mrb[0].mxu0
  %v806 = vadd.f32 0.0, %v805
  %v807 = vpop.f32.mrb[0].mxu0
  %v808 = vpop.f32.mrb[0].mxu0
  %v809 = vadd.f32 0.0, %v808
  %v810 = vpop.f32.mrb[0].mxu0
  %811 = vmatprep.mubr.bf16.mxu0 0
  %812 = vmatmul.mubr.bf16.gmra.mrb[0].mxu0 %v681
  %v813 = vpop.f32.mrb[0].mxu0
  %v814 = vadd.f32 0.0, %v813
  %v815 = vpop.f32.mrb[0].mxu0
  %v816 = vpop.f32.mrb[0].mxu0
  %v817 = vadd.f32 0.0, %v816
  %v818 = vpop.f32.mrb[0].mxu0
  %819 = vdwg.mxu0
  %v820 = vpack.c.bf16 %v723, %v719
  %v821 = vpack.c.bf16 %v733, %v729
  %v822 = vpack.c.bf16 %v743, %v739
  %v823 = vpack.c.bf16 %v753, %v749
  %v824 = vpack.c.bf16 %v793, %v790
  %v825 = vpack.c.bf16 %v801, %v798
  %v826 = vpack.c.bf16 %v809, %v806
  %v827 = vpack.c.bf16 %v817, %v814
  %828 = vmatprep.subr.bf16.mxu0 0
  %829 = vmatpush1.bf16.msra.mxu0 %v820
  %830 = vmatprep.subr.bf16.mxu0 0
  %831 = vmatpush1.bf16.msra.mxu0 %v821
  %832 = vmatprep.subr.bf16.mxu0 0
  %833 = vmatpush1.bf16.msra.mxu0 %v822
  %834 = vmatprep.subr.bf16.mxu0 0
  %835 = vmatpush1.bf16.msra.mxu0 %v823
  %836 = vmatprep.subr.bf16.mxu0 0
  %837 = vmatpush1.bf16.msra.mxu0 %v824
  %838 = vmatprep.subr.bf16.mxu0 0
  %839 = vmatpush1.bf16.msra.mxu0 %v825
  %840 = vmatprep.subr.bf16.mxu0 0
  %841 = vmatpush1.bf16.msra.mxu0 %v826
  %842 = vmatprep.subr.bf16.mxu0 0
  %843 = vmatpush1.bf16.msra.mxu0 %v827
  %844 = vmatprep.subr.bf16.mxu0 0
  %845 = vmatpush1.bf16.msra.mxu0 0
  %846 = vmatprep.subr.bf16.mxu0 0
  %847 = vmatpush1.bf16.msra.mxu0 0
  %848 = vmatprep.subr.bf16.mxu0 0
  %849 = vmatpush1.bf16.msra.mxu0 0
  %850 = vmatprep.subr.bf16.mxu0 0
  %851 = vmatpush1.bf16.msra.mxu0 0
  %852 = vmatprep.subr.bf16.mxu0 0
  %853 = vmatpush1.bf16.msra.mxu0 0
  %854 = vmatprep.subr.bf16.mxu0 0
  %855 = vmatpush1.bf16.msra.mxu0 0
  %856 = vmatprep.subr.bf16.mxu0 0
  %857 = vmatpush1.bf16.msra.mxu0 0
  %858 = vmatprep.subr.bf16.mxu0 0
  %859 = vmatpush1.bf16.msra.mxu0 0
  %860 = vmatprep.mubr.bf16.mxu0 0
  %861 = vmatmul.mubr.bf16.gmra.mrb[0].mxu0 %v583
  %v862 = vpop.f32.mrb[0].mxu0
  %v863 = vadd.f32 0.0, %v862
  %v864 = vpop.f32.mrb[0].mxu0
  %v865 = vpop.f32.mrb[0].mxu0
  %v866 = vadd.f32 0.0, %v865
  %v867 = vpop.f32.mrb[0].mxu0
  %868 = vmatprep.mubr.bf16.mxu0 0
  %869 = vmatmul.mubr.bf16.gmra.mrb[0].mxu0 %v584
  %v870 = vpop.f32.mrb[0].mxu0
  %v871 = vadd.f32 0.0, %v870
  %v872 = vpop.f32.mrb[0].mxu0
  %v873 = vpop.f32.mrb[0].mxu0
  %v874 = vadd.f32 0.0, %v873
  %v875 = vpop.f32.mrb[0].mxu0
  %876 = vmatprep.mubr.bf16.mxu0 0
  %877 = vmatmul.mubr.bf16.gmra.mrb[0].mxu0 %v585
  %v878 = vpop.f32.mrb[0].mxu0
  %v879 = vadd.f32 0.0, %v878
  %v880 = vpop.f32.mrb[0].mxu0
  %v881 = vpop.f32.mrb[0].mxu0
  %v882 = vadd.f32 0.0, %v881
  %v883 = vpop.f32.mrb[0].mxu0
  %884 = vmatprep.mubr.bf16.mxu0 0
  %885 = vmatmul.mubr.bf16.gmra.mrb[0].mxu0 %v586
  %v886 = vpop.f32.mrb[0].mxu0
  %v887 = vadd.f32 0.0, %v886
  %v888 = vpop.f32.mrb[0].mxu0
  %v889 = vpop.f32.mrb[0].mxu0
  %v890 = vadd.f32 0.0, %v889
  %v891 = vpop.f32.mrb[0].mxu0
  %892 = vdwg.mxu0
  %v893 = vadd.f32 %v717, %v863
  %v894 = vadd.f32 %v721, %v866
  %v895 = vadd.f32 %v727, %v871
  %v896 = vadd.f32 %v731, %v874
  %v897 = vadd.f32 %v737, %v879
  %v898 = vadd.f32 %v741, %v882
  %v899 = vadd.f32 %v747, %v887
  %v900 = vadd.f32 %v751, %v890
  %v901 = vadd.f32 %v893, %v668
  %v902 = vadd.f32 %v894, %v668
  %v903 = vadd.f32 %v895, %v668
  %v904 = vadd.f32 %v896, %v668
  %v905 = vadd.f32 %v897, %v668
  %v906 = vadd.f32 %v898, %v668
  %v907 = vadd.f32 %v899, %v668
  %v908 = vadd.f32 %v900, %v668
  %v909 = vpack.c.bf16 %v902, %v901
  %v910 = vpack.c.bf16 %v904, %v903
  %v911 = vpack.c.bf16 %v906, %v905
  %v912 = vpack.c.bf16 %v908, %v907
  %v913 = vld [vmem:[%s6] sm:$0xff]
  %v914 = vld [vmem:[%s6 + $0x8] sm:$0xf]
  %v915 = vld [vmem:[%s6 + $0xc] sm:$0xff]
  %v916 = vld [vmem:[%s6 + $0x14] sm:$0xf]
  %v917 = vld [vmem:[%s6 + $0x18] sm:$0xff]
  %v918 = vld [vmem:[%s6 + $0x20] sm:$0xf]
  %v919 = vld [vmem:[%s6 + $0x24] sm:$0xff]
  %v920 = vld [vmem:[%s6 + $0x2c] sm:$0xf]
  %v921 = vld [vmem:[%s6 + $0x30] sm:$0xff]
  %v922 = vld [vmem:[%s6 + $0x38] sm:$0xf]
  %v923 = vld [vmem:[%s6 + $0x3c] sm:$0xff]
  %v924 = vld [vmem:[%s6 + $0x44] sm:$0xf]
  %v925 = vld [vmem:[%s6 + $0x48] sm:$0xff]
  %v926 = vld [vmem:[%s6 + $0x50] sm:$0xf]
  %v927 = vld [vmem:[%s6 + $0x54] sm:$0xff]
  %v928 = vld [vmem:[%s6 + $0x5c] sm:$0xf]
  %v929 = vld [vmem:[%s6 + $0x60] sm:$0xff]
  %v930 = vld [vmem:[%s6 + $0x68] sm:$0xf]
  %v931 = vld [vmem:[%s6 + $0x6c] sm:$0xff]
  %v932 = vld [vmem:[%s6 + $0x74] sm:$0xf]
  %v933 = vld [vmem:[%s6 + $0x78] sm:$0xff]
  %v934 = vld [vmem:[%s6 + $0x80] sm:$0xf]
  %v935 = vld [vmem:[%s6 + $0x84] sm:$0xff]
  %v936 = vld [vmem:[%s6 + $0x8c] sm:$0xf]
  %v937 = vld [vmem:[%s6 + $0x90] sm:$0xff]
  %v938 = vld [vmem:[%s6 + $0x98] sm:$0xf]
  %v939 = vld [vmem:[%s6 + $0x9c] sm:$0xff]
  %v940 = vld [vmem:[%s6 + $0xa4] sm:$0xf]
  %v941 = vld [vmem:[%s6 + $0xa8] sm:$0xff]
  %v942 = vld [vmem:[%s6 + $0xb0] sm:$0xf]
  %v943 = vld [vmem:[%s6 + $0xb4] sm:$0xff]
  %v944 = vld [vmem:[%s6 + $0xbc] sm:$0xf]
  %v945 = vld [vmem:[%s7] sm:$0x7]
  %v947 = vlaneseq
  %v948 = vshrl.u32 %v947, 7
  %v949 = vsub.s32 0, %v948
  %v950 = vrot.slane %v945, %v949
  %v951 = vlaneseq
  %v952 = vshrl.u32 %v951, 7
  %v953 = vsub.s32 1, %v952
  %v954 = vrot.slane %v945, %v953
  %v955 = vlaneseq
  %v956 = vshrl.u32 %v955, 7
  %v957 = vsub.s32 2, %v956
  %v958 = vrot.slane %v945, %v957
  %v994 = vunpack.c.l.b16 %v913
  %v995 = vunpack.c.h.b16 %v913
  %v996 = vunpack.c.l.b16 %v914
  %v997 = vunpack.c.l.b16 %v915
  %v998 = vunpack.c.h.b16 %v915
  %v999 = vunpack.c.l.b16 %v916
  %v1000 = vunpack.c.l.b16 %v917
  %v1001 = vunpack.c.h.b16 %v917
  %v1002 = vunpack.c.l.b16 %v918
  %v1003 = vunpack.c.l.b16 %v919
  %v1004 = vunpack.c.h.b16 %v919
  %v1005 = vunpack.c.l.b16 %v920
  %v1006 = vunpack.c.l.b16 %v921
  %v1007 = vunpack.c.h.b16 %v921
  %v1008 = vunpack.c.l.b16 %v922
  %v1009 = vunpack.c.l.b16 %v923
  %v1010 = vunpack.c.h.b16 %v923
  %v1011 = vunpack.c.l.b16 %v924
  %v1012 = vunpack.c.l.b16 %v925
  %v1013 = vunpack.c.h.b16 %v925
  %v1014 = vunpack.c.l.b16 %v926
  %v1015 = vunpack.c.l.b16 %v927
  %v1016 = vunpack.c.h.b16 %v927
  %v1017 = vunpack.c.l.b16 %v928
  %v1018 = vunpack.c.l.b16 %v929
  %v1019 = vunpack.c.h.b16 %v929
  %v1020 = vunpack.c.l.b16 %v930
  %v1021 = vunpack.c.l.b16 %v931
  %v1022 = vunpack.c.h.b16 %v931
  %v1023 = vunpack.c.l.b16 %v932
  %v1024 = vunpack.c.l.b16 %v933
  %v1025 = vunpack.c.h.b16 %v933
  %v1026 = vunpack.c.l.b16 %v934
  %v1027 = vunpack.c.l.b16 %v935
  %v1028 = vunpack.c.h.b16 %v935
  %v1029 = vunpack.c.l.b16 %v936
  %v1030 = vunpack.c.l.b16 %v937
  %v1031 = vunpack.c.h.b16 %v937
  %v1032 = vunpack.c.l.b16 %v938
  %v1033 = vunpack.c.l.b16 %v939
  %v1034 = vunpack.c.h.b16 %v939
  %v1035 = vunpack.c.l.b16 %v940
  %v1036 = vunpack.c.l.b16 %v941
  %v1037 = vunpack.c.h.b16 %v941
  %v1038 = vunpack.c.l.b16 %v942
  %v1039 = vunpack.c.l.b16 %v943
  %v1040 = vunpack.c.h.b16 %v943
  %v1041 = vunpack.c.l.b16 %v944
  %v1042 = vpack.c.b16 %v997, %v994
  %v1043 = vpack.c.b16 %v998, %v995
  %v1044 = vpack.c.b16 %v999, %v996
  %v1045 = vpack.c.b16 %v1003, %v1000
  %v1046 = vpack.c.b16 %v1004, %v1001
  %v1047 = vpack.c.b16 %v1005, %v1002
  %v1048 = vpack.c.b16 %v1009, %v1006
  %v1049 = vpack.c.b16 %v1010, %v1007
  %v1050 = vpack.c.b16 %v1011, %v1008
  %v1051 = vpack.c.b16 %v1015, %v1012
  %v1052 = vpack.c.b16 %v1016, %v1013
  %v1053 = vpack.c.b16 %v1017, %v1014
  %v1054 = vpack.c.b16 %v1021, %v1018
  %v1055 = vpack.c.b16 %v1022, %v1019
  %v1056 = vpack.c.b16 %v1023, %v1020
  %v1057 = vpack.c.b16 %v1027, %v1024
  %v1058 = vpack.c.b16 %v1028, %v1025
  %v1059 = vpack.c.b16 %v1029, %v1026
  %v1060 = vpack.c.b16 %v1033, %v1030
  %v1061 = vpack.c.b16 %v1034, %v1031
  %v1062 = vpack.c.b16 %v1035, %v1032
  %v1063 = vpack.c.b16 %v1039, %v1036
  %v1064 = vpack.c.b16 %v1040, %v1037
  %v1065 = vpack.c.b16 %v1041, %v1038
  %1090 = vmatprep.subr.bf16.mxu0 %v1043
  %1091 = vmatpush1.bf16.msra.mxu0 %v1042
  %1092 = vmatprep.subr.bf16.mxu0 %v1046
  %1093 = vmatpush1.bf16.msra.mxu0 %v1045
  %1094 = vmatprep.subr.bf16.mxu0 %v1049
  %1095 = vmatpush1.bf16.msra.mxu0 %v1048
  %1096 = vmatprep.subr.bf16.mxu0 %v1052
  %1097 = vmatpush1.bf16.msra.mxu0 %v1051
  %1098 = vmatprep.subr.bf16.mxu0 %v1055
  %1099 = vmatpush1.bf16.msra.mxu0 %v1054
  %1100 = vmatprep.subr.bf16.mxu0 %v1058
  %1101 = vmatpush1.bf16.msra.mxu0 %v1057
  %1102 = vmatprep.subr.bf16.mxu0 %v1061
  %1103 = vmatpush1.bf16.msra.mxu0 %v1060
  %1104 = vmatprep.subr.bf16.mxu0 %v1064
  %1105 = vmatpush1.bf16.msra.mxu0 %v1063
  %1106 = vmatprep.subr.bf16.mxu0 0
  %1107 = vmatpush1.bf16.msra.mxu0 0
  %1108 = vmatprep.subr.bf16.mxu0 0
  %1109 = vmatpush1.bf16.msra.mxu0 0
  %1110 = vmatprep.subr.bf16.mxu0 0
  %1111 = vmatpush1.bf16.msra.mxu0 0
  %1112 = vmatprep.subr.bf16.mxu0 0
  %1113 = vmatpush1.bf16.msra.mxu0 0
  %1114 = vmatprep.subr.bf16.mxu0 0
  %1115 = vmatpush1.bf16.msra.mxu0 0
  %1116 = vmatprep.subr.bf16.mxu0 0
  %1117 = vmatpush1.bf16.msra.mxu0 0
  %1118 = vmatprep.subr.bf16.mxu0 0
  %1119 = vmatpush1.bf16.msra.mxu0 0
  %1120 = vmatprep.subr.bf16.mxu0 0
  %1121 = vmatpush1.bf16.msra.mxu0 0
  %1122 = vmatprep.mubr.bf16.mxu0 0
  %1123 = vmatmul.mubr.bf16.gmra.mrb[0].mxu0 %v909
  %v1124 = vpop.f32.mrb[0].mxu0
  %v1125 = vadd.f32 %v950, %v1124
  %v1126 = vpop.f32.mrb[0].mxu0
  %v1127 = vadd.f32 %v954, %v1126
  %v1128 = vpop.f32.mrb[0].mxu0
  %v1129 = vadd.f32 %v950, %v1128
  %v1130 = vpop.f32.mrb[0].mxu0
  %v1131 = vadd.f32 %v954, %v1130
  %1132 = vmatprep.mubr.bf16.mxu0 0
  %1133 = vmatmul.mubr.bf16.gmra.mrb[0].mxu0 %v910
  %v1134 = vpop.f32.mrb[0].mxu0
  %v1135 = vadd.f32 %v950, %v1134
  %v1136 = vpop.f32.mrb[0].mxu0
  %v1137 = vadd.f32 %v954, %v1136
  %v1138 = vpop.f32.mrb[0].mxu0
  %v1139 = vadd.f32 %v950, %v1138
  %v1140 = vpop.f32.mrb[0].mxu0
  %v1141 = vadd.f32 %v954, %v1140
  %1142 = vmatprep.mubr.bf16.mxu0 0
  %1143 = vmatmul.mubr.bf16.gmra.mrb[0].mxu0 %v911
  %v1144 = vpop.f32.mrb[0].mxu0
  %v1145 = vadd.f32 %v950, %v1144
  %v1146 = vpop.f32.mrb[0].mxu0
  %v1147 = vadd.f32 %v954, %v1146
  %v1148 = vpop.f32.mrb[0].mxu0
  %v1149 = vadd.f32 %v950, %v1148
  %v1150 = vpop.f32.mrb[0].mxu0
  %v1151 = vadd.f32 %v954, %v1150
  %1152 = vmatprep.mubr.bf16.mxu0 0
  %1153 = vmatmul.mubr.bf16.gmra.mrb[0].mxu0 %v912
  %v1154 = vpop.f32.mrb[0].mxu0
  %v1155 = vadd.f32 %v950, %v1154
  %v1156 = vpop.f32.mrb[0].mxu0
  %v1157 = vadd.f32 %v954, %v1156
  %v1158 = vpop.f32.mrb[0].mxu0
  %v1159 = vadd.f32 %v950, %v1158
  %v1160 = vpop.f32.mrb[0].mxu0
  %v1161 = vadd.f32 %v954, %v1160
  %1162 = vdwg.mxu0
  %1163 = vmatprep.subr.bf16.mxu0 0
  %1164 = vmatpush1.bf16.msra.mxu0 %v1044
  %1165 = vmatprep.subr.bf16.mxu0 0
  %1166 = vmatpush1.bf16.msra.mxu0 %v1047
  %1167 = vmatprep.subr.bf16.mxu0 0
  %1168 = vmatpush1.bf16.msra.mxu0 %v1050
  %1169 = vmatprep.subr.bf16.mxu0 0
  %1170 = vmatpush1.bf16.msra.mxu0 %v1053
  %1171 = vmatprep.subr.bf16.mxu0 0
  %1172 = vmatpush1.bf16.msra.mxu0 %v1056
  %1173 = vmatprep.subr.bf16.mxu0 0
  %1174 = vmatpush1.bf16.msra.mxu0 %v1059
  %1175 = vmatprep.subr.bf16.mxu0 0
  %1176 = vmatpush1.bf16.msra.mxu0 %v1062
  %1177 = vmatprep.subr.bf16.mxu0 0
  %1178 = vmatpush1.bf16.msra.mxu0 %v1065
  %1179 = vmatprep.subr.bf16.mxu0 0
  %1180 = vmatpush1.bf16.msra.mxu0 0
  %1181 = vmatprep.subr.bf16.mxu0 0
  %1182 = vmatpush1.bf16.msra.mxu0 0
  %1183 = vmatprep.subr.bf16.mxu0 0
  %1184 = vmatpush1.bf16.msra.mxu0 0
  %1185 = vmatprep.subr.bf16.mxu0 0
  %1186 = vmatpush1.bf16.msra.mxu0 0
  %1187 = vmatprep.subr.bf16.mxu0 0
  %1188 = vmatpush1.bf16.msra.mxu0 0
  %1189 = vmatprep.subr.bf16.mxu0 0
  %1190 = vmatpush1.bf16.msra.mxu0 0
  %1191 = vmatprep.subr.bf16.mxu0 0
  %1192 = vmatpush1.bf16.msra.mxu0 0
  %1193 = vmatprep.subr.bf16.mxu0 0
  %1194 = vmatpush1.bf16.msra.mxu0 0
  %1195 = vmatprep.mubr.bf16.mxu0 0
  %1196 = vmatmul.mubr.bf16.gmra.mrb[0].mxu0 %v909
  %v1197 = vpop.f32.mrb[0].mxu0
  %v1198 = vadd.f32 %v958, %v1197
  %v1199 = vpop.f32.mrb[0].mxu0
  %v1200 = vpop.f32.mrb[0].mxu0
  %v1201 = vadd.f32 %v958, %v1200
  %v1202 = vpop.f32.mrb[0].mxu0
  %1203 = vmatprep.mubr.bf16.mxu0 0
  %1204 = vmatmul.mubr.bf16.gmra.mrb[0].mxu0 %v910
  %v1205 = vpop.f32.mrb[0].mxu0
  %v1206 = vadd.f32 %v958, %v1205
  %v1207 = vpop.f32.mrb[0].mxu0
  %v1208 = vpop.f32.mrb[0].mxu0
  %v1209 = vadd.f32 %v958, %v1208
  %v1210 = vpop.f32.mrb[0].mxu0
  %1211 = vmatprep.mubr.bf16.mxu0 0
  %1212 = vmatmul.mubr.bf16.gmra.mrb[0].mxu0 %v911
  %v1213 = vpop.f32.mrb[0].mxu0
  %v1214 = vadd.f32 %v958, %v1213
  %v1215 = vpop.f32.mrb[0].mxu0
  %v1216 = vpop.f32.mrb[0].mxu0
  %v1217 = vadd.f32 %v958, %v1216
  %v1218 = vpop.f32.mrb[0].mxu0
  %1219 = vmatprep.mubr.bf16.mxu0 0
  %1220 = vmatmul.mubr.bf16.gmra.mrb[0].mxu0 %v912
  %v1221 = vpop.f32.mrb[0].mxu0
  %v1222 = vadd.f32 %v958, %v1221
  %v1223 = vpop.f32.mrb[0].mxu0
  %v1224 = vpop.f32.mrb[0].mxu0
  %v1225 = vadd.f32 %v958, %v1224
  %v1226 = vpop.f32.mrb[0].mxu0
  %1227 = vdwg.mxu0
  %vm1228 = vcmp.gt.f32.partialorder %v1198, 0.0
  %vm1229 = vcmp.gt.f32.partialorder %v1201, 0.0
  %vm1230 = vcmp.gt.f32.partialorder %v1206, 0.0
  %vm1231 = vcmp.gt.f32.partialorder %v1209, 0.0
  %vm1232 = vcmp.gt.f32.partialorder %v1214, 0.0
  %vm1233 = vcmp.gt.f32.partialorder %v1217, 0.0
  %vm1234 = vcmp.gt.f32.partialorder %v1222, 0.0
  %vm1235 = vcmp.gt.f32.partialorder %v1225, 0.0
  %v1236 = vsel %vm1228, 1, 0
  %v1237 = vsel %vm1229, 1, 0
  %v1238 = vsel %vm1230, 1, 0
  %v1239 = vsel %vm1231, 1, 0
  %v1240 = vsel %vm1232, 1, 0
  %v1241 = vsel %vm1233, 1, 0
  %v1242 = vsel %vm1234, 1, 0
  %v1243 = vsel %vm1235, 1, 0
  %1244 = vset.pattern.permute.xlu0 0
  %1245 = vperm.xlu0 %1244, %v1236
  %v1246 = vpop.permute.xlu0 %1245
  %1247 = vset.pattern.permute.xlu0 0
  %1248 = vperm.xlu0 %1247, %v1237
  %v1249 = vpop.permute.xlu0 %1248
  %1250 = vset.pattern.permute.xlu0 0
  %1251 = vperm.xlu0 %1250, %v1238
  %v1252 = vpop.permute.xlu0 %1251
  %1253 = vset.pattern.permute.xlu0 0
  %1254 = vperm.xlu0 %1253, %v1239
  %v1255 = vpop.permute.xlu0 %1254
  %1256 = vset.pattern.permute.xlu0 0
  %1257 = vperm.xlu0 %1256, %v1240
  %v1258 = vpop.permute.xlu0 %1257
  %1259 = vset.pattern.permute.xlu0 0
  %1260 = vperm.xlu0 %1259, %v1241
  %v1261 = vpop.permute.xlu0 %1260
  %1262 = vset.pattern.permute.xlu0 0
  %1263 = vperm.xlu0 %1262, %v1242
  %v1264 = vpop.permute.xlu0 %1263
  %1265 = vset.pattern.permute.xlu0 0
  %1266 = vperm.xlu0 %1265, %v1243
  %v1267 = vpop.permute.xlu0 %1266
  %vm1268 = vcmp.eq.s32.totalorder %v1246, 1
  %vm1269 = vcmp.eq.s32.totalorder %v1249, 1
  %vm1270 = vcmp.eq.s32.totalorder %v1252, 1
  %vm1271 = vcmp.eq.s32.totalorder %v1255, 1
  %vm1272 = vcmp.eq.s32.totalorder %v1258, 1
  %vm1273 = vcmp.eq.s32.totalorder %v1261, 1
  %vm1274 = vcmp.eq.s32.totalorder %v1264, 1
  %vm1275 = vcmp.eq.s32.totalorder %v1267, 1
  %v1276 = vsel %vm1268, %v1127, %v1125
  %v1277 = vsel %vm1269, %v1131, %v1129
  %v1278 = vsel %vm1270, %v1137, %v1135
  %v1279 = vsel %vm1271, %v1141, %v1139
  %v1280 = vsel %vm1272, %v1147, %v1145
  %v1281 = vsel %vm1273, %v1151, %v1149
  %v1282 = vsel %vm1274, %v1157, %v1155
  %v1283 = vsel %vm1275, %v1161, %v1159
  %vm1284 = vcmp.gt.f32.partialorder %v1276, 0.0
  %vm1285 = vcmp.gt.f32.partialorder %v1277, 0.0
  %vm1286 = vcmp.gt.f32.partialorder %v1278, 0.0
  %vm1287 = vcmp.gt.f32.partialorder %v1279, 0.0
  %vm1288 = vcmp.gt.f32.partialorder %v1280, 0.0
  %vm1289 = vcmp.gt.f32.partialorder %v1281, 0.0
  %vm1290 = vcmp.gt.f32.partialorder %v1282, 0.0
  %vm1291 = vcmp.gt.f32.partialorder %v1283, 0.0
  %v1292 = vmul.f32 %v1276, 0.01
  %v1293 = vmul.f32 %v1277, 0.01
  %v1294 = vmul.f32 %v1278, 0.01
  %v1295 = vmul.f32 %v1279, 0.01
  %v1296 = vmul.f32 %v1280, 0.01
  %v1297 = vmul.f32 %v1281, 0.01
  %v1298 = vmul.f32 %v1282, 0.01
  %v1299 = vmul.f32 %v1283, 0.01
  %v1300 = vsel %vm1284, %v1276, %v1292
  %v1301 = vsel %vm1285, %v1277, %v1293
  %v1302 = vsel %vm1286, %v1278, %v1294
  %v1303 = vsel %vm1287, %v1279, %v1295
  %v1304 = vsel %vm1288, %v1280, %v1296
  %v1305 = vsel %vm1289, %v1281, %v1297
  %v1306 = vsel %vm1290, %v1282, %v1298
  %v1307 = vsel %vm1291, %v1283, %v1299
  %v1308 = vpack.c.bf16 %v1301, %v1300
  %v1309 = vpack.c.bf16 %v1303, %v1302
  %v1310 = vpack.c.bf16 %v1305, %v1304
  %v1311 = vpack.c.bf16 %v1307, %v1306
  %v1312 = vld [vmem:[%s8] sm:$0xff]
  %v1313 = vld [vmem:[%s8 + $0x8] sm:$0xff]
  %v1314 = vld [vmem:[%s8 + $0x10] sm:$0xff]
  %v1315 = vld [vmem:[%s8 + $0x18] sm:$0xff]
  %v1316 = vld [vmem:[%s8 + $0x20] sm:$0xff]
  %v1317 = vld [vmem:[%s8 + $0x28] sm:$0xff]
  %v1318 = vld [vmem:[%s8 + $0x30] sm:$0xff]
  %v1319 = vld [vmem:[%s8 + $0x38] sm:$0xff]
  %v1320 = vld [vmem:[%s8 + $0x40] sm:$0xff]
  %v1321 = vld [vmem:[%s8 + $0x48] sm:$0xff]
  %v1322 = vld [vmem:[%s8 + $0x50] sm:$0xff]
  %v1323 = vld [vmem:[%s8 + $0x58] sm:$0xff]
  %v1324 = vld [vmem:[%s8 + $0x60] sm:$0xff]
  %v1325 = vld [vmem:[%s8 + $0x68] sm:$0xff]
  %v1326 = vld [vmem:[%s8 + $0x70] sm:$0xff]
  %v1327 = vld [vmem:[%s8 + $0x78] sm:$0xff]
  %v1328 = vld [vmem:[%s9] sm:$0x3]
  %v1330 = vlaneseq
  %v1331 = vshrl.u32 %v1330, 7
  %v1332 = vsub.s32 0, %v1331
  %v1333 = vrot.slane %v1328, %v1332
  %v1334 = vlaneseq
  %v1335 = vshrl.u32 %v1334, 7
  %v1336 = vsub.s32 1, %v1335
  %v1337 = vrot.slane %v1328, %v1336
  %v1356 = vunpack.c.l.b16 %v1312
  %v1357 = vunpack.c.h.b16 %v1312
  %v1358 = vunpack.c.l.b16 %v1313
  %v1359 = vunpack.c.h.b16 %v1313
  %v1360 = vunpack.c.l.b16 %v1314
  %v1361 = vunpack.c.h.b16 %v1314
  %v1362 = vunpack.c.l.b16 %v1315
  %v1363 = vunpack.c.h.b16 %v1315
  %v1364 = vunpack.c.l.b16 %v1316
  %v1365 = vunpack.c.h.b16 %v1316
  %v1366 = vunpack.c.l.b16 %v1317
  %v1367 = vunpack.c.h.b16 %v1317
  %v1368 = vunpack.c.l.b16 %v1318
  %v1369 = vunpack.c.h.b16 %v1318
  %v1370 = vunpack.c.l.b16 %v1319
  %v1371 = vunpack.c.h.b16 %v1319
  %v1372 = vunpack.c.l.b16 %v1320
  %v1373 = vunpack.c.h.b16 %v1320
  %v1374 = vunpack.c.l.b16 %v1321
  %v1375 = vunpack.c.h.b16 %v1321
  %v1376 = vunpack.c.l.b16 %v1322
  %v1377 = vunpack.c.h.b16 %v1322
  %v1378 = vunpack.c.l.b16 %v1323
  %v1379 = vunpack.c.h.b16 %v1323
  %v1380 = vunpack.c.l.b16 %v1324
  %v1381 = vunpack.c.h.b16 %v1324
  %v1382 = vunpack.c.l.b16 %v1325
  %v1383 = vunpack.c.h.b16 %v1325
  %v1384 = vunpack.c.l.b16 %v1326
  %v1385 = vunpack.c.h.b16 %v1326
  %v1386 = vunpack.c.l.b16 %v1327
  %v1387 = vunpack.c.h.b16 %v1327
  %v1388 = vpack.c.b16 %v1358, %v1356
  %v1389 = vpack.c.b16 %v1359, %v1357
  %v1390 = vpack.c.b16 %v1362, %v1360
  %v1391 = vpack.c.b16 %v1363, %v1361
  %v1392 = vpack.c.b16 %v1366, %v1364
  %v1393 = vpack.c.b16 %v1367, %v1365
  %v1394 = vpack.c.b16 %v1370, %v1368
  %v1395 = vpack.c.b16 %v1371, %v1369
  %v1396 = vpack.c.b16 %v1374, %v1372
  %v1397 = vpack.c.b16 %v1375, %v1373
  %v1398 = vpack.c.b16 %v1378, %v1376
  %v1399 = vpack.c.b16 %v1379, %v1377
  %v1400 = vpack.c.b16 %v1382, %v1380
  %v1401 = vpack.c.b16 %v1383, %v1381
  %v1402 = vpack.c.b16 %v1386, %v1384
  %v1403 = vpack.c.b16 %v1387, %v1385
  %1420 = vmatprep.subr.bf16.mxu0 %v1389
  %1421 = vmatpush1.bf16.msra.mxu0 %v1388
  %1422 = vmatprep.subr.bf16.mxu0 %v1391
  %1423 = vmatpush1.bf16.msra.mxu0 %v1390
  %1424 = vmatprep.subr.bf16.mxu0 %v1393
  %1425 = vmatpush1.bf16.msra.mxu0 %v1392
  %1426 = vmatprep.subr.bf16.mxu0 %v1395
  %1427 = vmatpush1.bf16.msra.mxu0 %v1394
  %1428 = vmatprep.subr.bf16.mxu0 %v1397
  %1429 = vmatpush1.bf16.msra.mxu0 %v1396
  %1430 = vmatprep.subr.bf16.mxu0 %v1399
  %1431 = vmatpush1.bf16.msra.mxu0 %v1398
  %1432 = vmatprep.subr.bf16.mxu0 %v1401
  %1433 = vmatpush1.bf16.msra.mxu0 %v1400
  %1434 = vmatprep.subr.bf16.mxu0 %v1403
  %1435 = vmatpush1.bf16.msra.mxu0 %v1402
  %1436 = vmatprep.subr.bf16.mxu0 0
  %1437 = vmatpush1.bf16.msra.mxu0 0
  %1438 = vmatprep.subr.bf16.mxu0 0
  %1439 = vmatpush1.bf16.msra.mxu0 0
  %1440 = vmatprep.subr.bf16.mxu0 0
  %1441 = vmatpush1.bf16.msra.mxu0 0
  %1442 = vmatprep.subr.bf16.mxu0 0
  %1443 = vmatpush1.bf16.msra.mxu0 0
  %1444 = vmatprep.subr.bf16.mxu0 0
  %1445 = vmatpush1.bf16.msra.mxu0 0
  %1446 = vmatprep.subr.bf16.mxu0 0
  %1447 = vmatpush1.bf16.msra.mxu0 0
  %1448 = vmatprep.subr.bf16.mxu0 0
  %1449 = vmatpush1.bf16.msra.mxu0 0
  %1450 = vmatprep.subr.bf16.mxu0 0
  %1451 = vmatpush1.bf16.msra.mxu0 0
  %1452 = vmatprep.mubr.bf16.mxu0 0
  %1453 = vmatmul.mubr.bf16.gmra.mrb[0].mxu0 %v1308
  %v1454 = vpop.f32.mrb[0].mxu0
  %v1455 = vadd.f32 %v1333, %v1454
  %v1456 = vpop.f32.mrb[0].mxu0
  %v1457 = vadd.f32 %v1337, %v1456
  %v1458 = vpop.f32.mrb[0].mxu0
  %v1459 = vadd.f32 %v1333, %v1458
  %v1460 = vpop.f32.mrb[0].mxu0
  %v1461 = vadd.f32 %v1337, %v1460
  %1462 = vmatprep.mubr.bf16.mxu0 0
  %1463 = vmatmul.mubr.bf16.gmra.mrb[0].mxu0 %v1309
  %v1464 = vpop.f32.mrb[0].mxu0
  %v1465 = vadd.f32 %v1333, %v1464
  %v1466 = vpop.f32.mrb[0].mxu0
  %v1467 = vadd.f32 %v1337, %v1466
  %v1468 = vpop.f32.mrb[0].mxu0
  %v1469 = vadd.f32 %v1333, %v1468
  %v1470 = vpop.f32.mrb[0].mxu0
  %v1471 = vadd.f32 %v1337, %v1470
  %1472 = vmatprep.mubr.bf16.mxu0 0
  %1473 = vmatmul.mubr.bf16.gmra.mrb[0].mxu0 %v1310
  %v1474 = vpop.f32.mrb[0].mxu0
  %v1475 = vadd.f32 %v1333, %v1474
  %v1476 = vpop.f32.mrb[0].mxu0
  %v1477 = vadd.f32 %v1337, %v1476
  %v1478 = vpop.f32.mrb[0].mxu0
  %v1479 = vadd.f32 %v1333, %v1478
  %v1480 = vpop.f32.mrb[0].mxu0
  %v1481 = vadd.f32 %v1337, %v1480
  %1482 = vmatprep.mubr.bf16.mxu0 0
  %1483 = vmatmul.mubr.bf16.gmra.mrb[0].mxu0 %v1311
  %v1484 = vpop.f32.mrb[0].mxu0
  %v1485 = vadd.f32 %v1333, %v1484
  %v1486 = vpop.f32.mrb[0].mxu0
  %v1487 = vadd.f32 %v1337, %v1486
  %v1488 = vpop.f32.mrb[0].mxu0
  %v1489 = vadd.f32 %v1333, %v1488
  %v1490 = vpop.f32.mrb[0].mxu0
  %v1491 = vadd.f32 %v1337, %v1490
  %1492 = vdwg.mxu0
  %v1493 = vsel %vm1268, %v1457, %v1455
  %v1494 = vsel %vm1269, %v1461, %v1459
  %v1495 = vsel %vm1270, %v1467, %v1465
  %v1496 = vsel %vm1271, %v1471, %v1469
  %v1497 = vsel %vm1272, %v1477, %v1475
  %v1498 = vsel %vm1273, %v1481, %v1479
  %v1499 = vsel %vm1274, %v1487, %v1485
  %v1500 = vsel %vm1275, %v1491, %v1489
  %1501 = vst [vmem:[%s10] sm:$0xff] %v1493
  %1502 = vst [vmem:[%s10 + $0x8] sm:$0xff] %v1494
  %1503 = vst [vmem:[%s10 + $0x10] sm:$0xff] %v1495
  %1504 = vst [vmem:[%s10 + $0x18] sm:$0xff] %v1496
  %1505 = vst [vmem:[%s10 + $0x20] sm:$0xff] %v1497
  %1506 = vst [vmem:[%s10 + $0x28] sm:$0xff] %v1498
  %1507 = vst [vmem:[%s10 + $0x30] sm:$0xff] %v1499
  %1508 = vst [vmem:[%s10 + $0x38] sm:$0xff] %v1500
  // Predicated region
  $region42: #{botrgcn_fmoe1_forward.1} parent=0 // pred_check
    _
  $region43: #{botrgcn_fmoe1_forward.1} parent=0 // pred_check_branch
    %1510 = sbr.rel (0) target = $region45
  $region44: #{botrgcn_fmoe1_forward.1} parent=0 // pred_region
    _
  $region45: #{botrgcn_fmoe1_forward.1} parent=0 // pred_fallthru
    _
  // Predicated region
  $region46: #{botrgcn_fmoe1_forward.1} parent=0 // pred_check
    _
  $region47: #{botrgcn_fmoe1_forward.1} parent=0 // pred_check_branch
    %1512 = sbr.rel (0) target = $region49
  $region48: #{botrgcn_fmoe1_forward.1} parent=0 // pred_region
    _
  $region49: #{botrgcn_fmoe1_forward.1} parent=0 // pred_fallthru
    _

</llo_original>
